<compile_context>
chip_gen: v7x
topology: tpu7x:2x2x1
jax: 0.10.0
libtpu: 0.0.40
codegen_flags: <defaults>
</compile_context>

<pallas_src>
import numpy as np

import jax
import jax.numpy as jnp
from jax.experimental import pallas as pl
from jax.experimental.pallas import tpu as pltpu  # noqa: F401  (TPU backend import)

# ---------------- config (small synthetic CLIP vision tower) ----------------
BATCH = 2
CHANNELS = 3
IMAGE_SIZE = 16
PATCH_SIZE = 8
HIDDEN = 32
NUM_HEADS = 4
HEAD_DIM = HIDDEN // NUM_HEADS
INTERMEDIATE = 64
NUM_LAYERS = 2
SELECT_LAYER = -2
SELECT_FEATURE = "patch"
LN_EPS = 1e-5

NUM_PATCHES = (IMAGE_SIZE // PATCH_SIZE) ** 2            # 4
SEQ = NUM_PATCHES + 1                                    # 5 (CLS + patches)

# hidden_states[SELECT_LAYER] == output after this many encoder layers, so we only
# have to run that many layers inside the kernel (SELECT_LAYER=-2 -> NUM_LAYERS-1).
NEEDED_LAYERS = SELECT_LAYER if SELECT_LAYER >= 0 else NUM_LAYERS + 1 + SELECT_LAYER
_N_LAYER_REFS = 12  # params per layer handed to the fused kernel


# ---------------------------- fused Pallas kernel ----------------------------
def _mm(x, w):
    # bf16 MXU inputs, f32 accumulation.
    return jnp.dot(x.astype(jnp.bfloat16), w.astype(jnp.bfloat16),
                   preferred_element_type=jnp.float32)


def _ln(x, g, b):
    m = jnp.mean(x, axis=-1, keepdims=True)
    v = jnp.mean((x - m) ** 2, axis=-1, keepdims=True)
    return (x - m) * jax.lax.rsqrt(v + LN_EPS) * g + b


def _tower_kernel(*refs):
    """refs = (patches, patch_w, class_emb, pos_emb, pre_ln_g, pre_ln_b,
               [12 refs per needed layer...], out)"""
    out_ref = refs[-1]
    patches_ref, patch_w_ref, cls_ref, pos_ref, pre_g_ref, pre_b_ref = refs[:6]
    layer_refs = refs[6:-1]

    B, S, D, P = BATCH, SEQ, HIDDEN, NUM_PATCHES
    NH, HD = NUM_HEADS, HEAD_DIM
    scale = 1.0 / float(np.sqrt(HEAD_DIM))

    # --- patch embedding: Conv2d(kernel=stride=PATCH, bias=False) as one MXU matmul ---
    patch_emb = _mm(patches_ref[...], patch_w_ref[...])          # (B*P, D) f32

    # --- CLS token + positional embedding, assembled in-register ---
    pos = pos_ref[...]                                           # (S, D)
    cls_row = cls_ref[...] + pos[0:1, :]                         # (1, D)
    pos_patch = pos[1:, :]                                       # (P, D)
    rows = []
    for b in range(B):
        rows.append(cls_row)
        rows.append(patch_emb[b * P:(b + 1) * P, :] + pos_patch)
    h = jnp.concatenate(rows, axis=0)                            # (B*S, D)

    # --- pre_layrnorm (hidden_states[0]) ---
    h = _ln(h, pre_g_ref[...], pre_b_ref[...])

    # --- encoder layers (only the ones needed for select_layer) ---
    for li in range(NEEDED_LAYERS):
        (ln1_g, ln1_b, qkv_w, qkv_b, o_w, o_b,
         ln2_g, ln2_b, fc1_w, fc1_b, fc2_w, fc2_b) = layer_refs[
            li * _N_LAYER_REFS:(li + 1) * _N_LAYER_REFS]

        # self-attention block
        resid = h
        x = _ln(h, ln1_g[...], ln1_b[...])
        qkv = _mm(x, qkv_w[...]) + qkv_b[...]                    # (B*S, 3D), fused QKV
        q = qkv[:, :D]
        k = qkv[:, D:2 * D]
        v = qkv[:, 2 * D:]

        batch_rows = []
        for b in range(B):                                       # static unroll (tiny)
            qb = q[b * S:(b + 1) * S, :]
            kb = k[b * S:(b + 1) * S, :]
            vb = v[b * S:(b + 1) * S, :]
            head_outs = []
            for hh in range(NH):
                qh = qb[:, hh * HD:(hh + 1) * HD].astype(jnp.bfloat16)
                kh = kb[:, hh * HD:(hh + 1) * HD].astype(jnp.bfloat16)
                vh = vb[:, hh * HD:(hh + 1) * HD].astype(jnp.bfloat16)
                s = jax.lax.dot_general(
                    qh, kh, (((1,), (1,)), ((), ())),
                    preferred_element_type=jnp.float32) * scale  # (S, S)
                m = jnp.max(s, axis=-1, keepdims=True)
                p = jnp.exp(s - m)
                p = p / jnp.sum(p, axis=-1, keepdims=True)
                head_outs.append(
                    jnp.dot(p.astype(jnp.bfloat16), vh,
                            preferred_element_type=jnp.float32))  # (S, HD)
            batch_rows.append(jnp.concatenate(head_outs, axis=-1))  # (S, D)
        attn = jnp.concatenate(batch_rows, axis=0)               # (B*S, D)
        attn = _mm(attn, o_w[...]) + o_b[...]
        h = resid + attn

        # MLP block (fc1 + quick_gelu + fc2)
        resid = h
        x = _ln(h, ln2_g[...], ln2_b[...])
        y = _mm(x, fc1_w[...]) + fc1_b[...]
        y = y * jax.nn.sigmoid(1.702 * y)                        # quick_gelu
        y = _mm(y, fc2_w[...]) + fc2_b[...]
        h = resid + y

    # --- feature_select('patch'): drop CLS, emit lane-dense (B, P*D) slab ---
    # TODO(synk): 'cls_patch' select_feature not needed for this config.
    out_rows = []
    for b in range(B):
        pieces = [h[b * S + 1 + i:b * S + 2 + i, :] for i in range(P)]   # P x (1, D)
        out_rows.append(jnp.concatenate(pieces, axis=-1))                 # (1, P*D)
    out_ref[...] = jnp.concatenate(out_rows, axis=0)                      # (B, P*D)


# ---------------------------- wrapper -----------------------------------------
def clip_vision_tower_forward(images, params):
    """images: (B, C, H, W) float32 NCHW. Returns (B, NUM_PATCHES, HIDDEN)."""
    B, C, H, W = images.shape
    P = PATCH_SIZE
    nh, nw = H // P, W // P
    npatch = nh * nw
    D = HIDDEN

    # Conv2d(kernel=stride=P) unrolled: layout-only reshape/transpose here,
    # the actual matmul runs inside the fused kernel.
    patches = (
        images.reshape(B, C, nh, P, nw, P)
        .transpose(0, 2, 4, 1, 3, 5)
        .reshape(B * npatch, C * P * P)
        .astype(jnp.float32)
    )

    wdt = jnp.bfloat16  # MXU weights cast once here -> half the weight DMA bytes
    args = [
        patches,
        params["patch_w"].astype(wdt),
        params["class_emb"].reshape(1, D),
        params["pos_emb"],
        params["pre_ln_g"].reshape(1, D),
        params["pre_ln_b"].reshape(1, D),
    ]
    for layer in params["layers"][:NEEDED_LAYERS]:
        qkv_w = jnp.concatenate([layer["q_w"], layer["k_w"], layer["v_w"]], axis=1)
        qkv_b = jnp.concatenate([layer["q_b"], layer["k_b"], layer["v_b"]])
        args += [
            layer["ln1_g"].reshape(1, D), layer["ln1_b"].reshape(1, D),
            qkv_w.astype(wdt), qkv_b.reshape(1, 3 * D),
            layer["o_w"].astype(wdt), layer["o_b"].reshape(1, D),
            layer["ln2_g"].reshape(1, D), layer["ln2_b"].reshape(1, D),
            layer["fc1_w"].astype(wdt), layer["fc1_b"].reshape(1, INTERMEDIATE),
            layer["fc2_w"].astype(wdt), layer["fc2_b"].reshape(1, D),
        ]

    out = pl.pallas_call(
        _tower_kernel,
        out_shape=jax.ShapeDtypeStruct((B, npatch * D), jnp.float32),
    )(*args)

    return out.reshape(B, npatch, D).astype(images.dtype)


# ---------------------------- parameter init ---------------------------------
def init_params(key):
    def nrm(k, shape, scale=0.02):
        return scale * jax.random.normal(k, shape, dtype=jnp.float32)

    keys = jax.random.split(key, 8 + NUM_LAYERS)
    params = {
        "patch_w": nrm(keys[0], (CHANNELS * PATCH_SIZE * PATCH_SIZE, HIDDEN)),
        "class_emb": nrm(keys[1], (HIDDEN,)),
        "pos_emb": nrm(keys[2], (SEQ, HIDDEN)),
        "pre_ln_g": jnp.ones((HIDDEN,), jnp.float32),
        "pre_ln_b": jnp.zeros((HIDDEN,), jnp.float32),
        "layers": [],
    }
    for li in range(NUM_LAYERS):
        lk = jax.random.split(keys[8 + li], 8)
        params["layers"].append(
            {
                "ln1_g": jnp.ones((HIDDEN,), jnp.float32),
                "ln1_b": jnp.zeros((HIDDEN,), jnp.float32),
                "q_w": nrm(lk[0], (HIDDEN, HIDDEN)),
                "q_b": jnp.zeros((HIDDEN,), jnp.float32),
                "k_w": nrm(lk[1], (HIDDEN, HIDDEN)),
                "k_b": jnp.zeros((HIDDEN,), jnp.float32),
                "v_w": nrm(lk[2], (HIDDEN, HIDDEN)),
                "v_b": jnp.zeros((HIDDEN,), jnp.float32),
                "o_w": nrm(lk[3], (HIDDEN, HIDDEN)),
                "o_b": jnp.zeros((HIDDEN,), jnp.float32),
                "ln2_g": jnp.ones((HIDDEN,), jnp.float32),
                "ln2_b": jnp.zeros((HIDDEN,), jnp.float32),
                "fc1_w": nrm(lk[4], (HIDDEN, INTERMEDIATE)),
                "fc1_b": jnp.zeros((INTERMEDIATE,), jnp.float32),
                "fc2_w": nrm(lk[5], (INTERMEDIATE, HIDDEN)),
                "fc2_b": jnp.zeros((HIDDEN,), jnp.float32),
            }
        )
    return params


# ---------------------------- pure-JAX reference ------------------------------
def _ref_forward(images, params):
    B, C, H, W = images.shape
    P = PATCH_SIZE
    nh, nw = H // P, W // P
    npatch = nh * nw
    D = HIDDEN
    patches = (
        images.reshape(B, C, nh, P, nw, P)
        .transpose(0, 2, 4, 1, 3, 5)
        .reshape(B, npatch, C * P * P)
    )
    h = patches @ params["patch_w"]
    cls = jnp.broadcast_to(params["class_emb"][None, None, :], (B, 1, D))
    h = jnp.concatenate([cls, h], axis=1) + params["pos_emb"][None]
    S = h.shape[1]

    def ln(x, g, b):
        m = x.mean(-1, keepdims=True)
        v = ((x - m) ** 2).mean(-1, keepdims=True)
        return (x - m) * jax.lax.rsqrt(v + LN_EPS) * g + b

    h = ln(h, params["pre_ln_g"], params["pre_ln_b"])
    hs = [h]
    for layer in params["layers"]:
        r = h
        x = ln(h, layer["ln1_g"], layer["ln1_b"])
        q = (x @ layer["q_w"] + layer["q_b"]).reshape(B, S, NUM_HEADS, HEAD_DIM)
        k = (x @ layer["k_w"] + layer["k_b"]).reshape(B, S, NUM_HEADS, HEAD_DIM)
        v = (x @ layer["v_w"] + layer["v_b"]).reshape(B, S, NUM_HEADS, HEAD_DIM)
        s = jnp.einsum("bqhd,bkhd->bhqk", q, k) / np.sqrt(HEAD_DIM)
        p = jax.nn.softmax(s, axis=-1)
        a = jnp.einsum("bhqk,bkhd->bqhd", p, v).reshape(B, S, D)
        h = r + (a @ layer["o_w"] + layer["o_b"])
        r = h
        x = ln(h, layer["ln2_g"], layer["ln2_b"])
        y = x @ layer["fc1_w"] + layer["fc1_b"]
        y = y * jax.nn.sigmoid(1.702 * y)
        h = r + (y @ layer["fc2_w"] + layer["fc2_b"])
        hs.append(h)
    f = hs[SELECT_LAYER]
    return f[:, 1:]


# ---------------------------- main --------------------------------------------
if __name__ == "__main__":
    key = jax.random.PRNGKey(0)
    k_img, k_par = jax.random.split(key)
    images = jax.random.normal(
        k_img, (BATCH, CHANNELS, IMAGE_SIZE, IMAGE_SIZE), dtype=jnp.float32
    )
    params = init_params(k_par)

    fwd = jax.jit(clip_vision_tower_forward)
    out = jax.block_until_ready(fwd(images, params))
    assert out.shape == (BATCH, NUM_PATCHES, HIDDEN), out.shape

    ref = jax.block_until_ready(_ref_forward(images, params))
    np.testing.assert_allclose(np.asarray(out), np.asarray(ref), atol=2e-2, rtol=2e-2)

    print("KERNEL_OK")
</pallas_src>

<mosaic_0001>
module attributes {stable_mosaic.version = 11 : i64} {
  func.func @_tower_kernel(%arg0: memref<8x192xf32, #tpu.memory_space<vmem>>, %arg1: memref<192x32xbf16, #tpu.memory_space<vmem>>, %arg2: memref<1x32xf32, #tpu.memory_space<vmem>>, %arg3: memref<5x32xf32, #tpu.memory_space<vmem>>, %arg4: memref<1x32xf32, #tpu.memory_space<vmem>>, %arg5: memref<1x32xf32, #tpu.memory_space<vmem>>, %arg6: memref<1x32xf32, #tpu.memory_space<vmem>>, %arg7: memref<1x32xf32, #tpu.memory_space<vmem>>, %arg8: memref<32x96xbf16, #tpu.memory_space<vmem>>, %arg9: memref<1x96xf32, #tpu.memory_space<vmem>>, %arg10: memref<32x32xbf16, #tpu.memory_space<vmem>>, %arg11: memref<1x32xf32, #tpu.memory_space<vmem>>, %arg12: memref<1x32xf32, #tpu.memory_space<vmem>>, %arg13: memref<1x32xf32, #tpu.memory_space<vmem>>, %arg14: memref<32x64xbf16, #tpu.memory_space<vmem>>, %arg15: memref<1x64xf32, #tpu.memory_space<vmem>>, %arg16: memref<64x32xbf16, #tpu.memory_space<vmem>>, %arg17: memref<1x32xf32, #tpu.memory_space<vmem>>, %arg18: memref<2x128xf32, #tpu.memory_space<vmem>>) attributes {dimension_semantics = [], scalar_prefetch = 0 : i64, scratch_operands = 0 : i64, tpu.core_type = #tpu.core_type<tc>} {
    %c0 = arith.constant 0 : index
    %c0_0 = arith.constant 0 : index
    %0 = vector.load %arg0[%c0, %c0_0] : memref<8x192xf32, #tpu.memory_space<vmem>>, vector<8x192xf32>
    %c0_1 = arith.constant 0 : index
    %c0_2 = arith.constant 0 : index
    %1 = vector.load %arg1[%c0_1, %c0_2] : memref<192x32xbf16, #tpu.memory_space<vmem>>, vector<192x32xbf16>
    %2 = arith.truncf %0 : vector<8x192xf32> to vector<8x192xbf16>
    %cst = arith.constant dense<0.000000e+00> : vector<8x32xf32>
    %3 = tpu.matmul %2, %1, %cst {dimension_numbers = #tpu.dot_dimension_numbers<[1], [0], [0], [1], [0, 0, 1, 1], [], []>} : vector<8x192xbf16>, vector<192x32xbf16>, vector<8x32xf32> -> vector<8x32xf32>
    %c0_3 = arith.constant 0 : index
    %c0_4 = arith.constant 0 : index
    %4 = vector.load %arg3[%c0_3, %c0_4] : memref<5x32xf32, #tpu.memory_space<vmem>>, vector<5x32xf32>
    %c0_5 = arith.constant 0 : index
    %c0_6 = arith.constant 0 : index
    %5 = vector.load %arg2[%c0_5, %c0_6] : memref<1x32xf32, #tpu.memory_space<vmem>>, vector<1x32xf32>
    %6 = vector.extract_strided_slice %4 {offsets = [0, 0], sizes = [1, 32], strides = [1, 1]} : vector<5x32xf32> to vector<1x32xf32>
    %7 = arith.addf %5, %6 : vector<1x32xf32>
    %8 = vector.extract_strided_slice %4 {offsets = [1, 0], sizes = [4, 32], strides = [1, 1]} : vector<5x32xf32> to vector<4x32xf32>
    %9 = vector.extract_strided_slice %3 {offsets = [0, 0], sizes = [4, 32], strides = [1, 1]} : vector<8x32xf32> to vector<4x32xf32>
    %10 = arith.addf %9, %8 : vector<4x32xf32>
    %11 = vector.extract_strided_slice %3 {offsets = [4, 0], sizes = [4, 32], strides = [1, 1]} : vector<8x32xf32> to vector<4x32xf32>
    %12 = arith.addf %11, %8 : vector<4x32xf32>
    %13 = tpu.concatenate %7, %10, %7, %12 in 0 : vector<1x32xf32>, vector<4x32xf32>, vector<1x32xf32>, vector<4x32xf32> -> vector<10x32xf32>
    %c0_7 = arith.constant 0 : index
    %c0_8 = arith.constant 0 : index
    %14 = vector.load %arg4[%c0_7, %c0_8] : memref<1x32xf32, #tpu.memory_space<vmem>>, vector<1x32xf32>
    %c0_9 = arith.constant 0 : index
    %c0_10 = arith.constant 0 : index
    %15 = vector.load %arg5[%c0_9, %c0_10] : memref<1x32xf32, #tpu.memory_space<vmem>>, vector<1x32xf32>
    %cst_11 = arith.constant dense<0.000000e+00> : vector<10xf32>
    %16 = vector.multi_reduction <add>, %13, %cst_11 [1] : vector<10x32xf32> to vector<10xf32>
    %17 = vector.shape_cast %16 : vector<10xf32> to vector<10x1xf32>
    %cst_12 = arith.constant 3.200000e+01 : f32
    %18 = vector.broadcast %cst_12 : f32 to vector<10x1xf32>
    %19 = arith.divf %17, %18 : vector<10x1xf32>
    %20 = vector.broadcast %19 : vector<10x1xf32> to vector<10x32xf32>
    %21 = arith.subf %13, %20 : vector<10x32xf32>
    %22 = arith.mulf %21, %21 : vector<10x32xf32>
    %cst_13 = arith.constant dense<0.000000e+00> : vector<10xf32>
    %23 = vector.multi_reduction <add>, %22, %cst_13 [1] : vector<10x32xf32> to vector<10xf32>
    %24 = vector.shape_cast %23 : vector<10xf32> to vector<10x1xf32>
    %cst_14 = arith.constant 3.200000e+01 : f32
    %25 = vector.broadcast %cst_14 : f32 to vector<10x1xf32>
    %26 = arith.divf %24, %25 : vector<10x1xf32>
    %27 = vector.broadcast %19 : vector<10x1xf32> to vector<10x32xf32>
    %28 = arith.subf %13, %27 : vector<10x32xf32>
    %cst_15 = arith.constant 9.99999974E-6 : f32
    %29 = vector.broadcast %cst_15 : f32 to vector<10x1xf32>
    %30 = arith.addf %26, %29 : vector<10x1xf32>
    %31 = math.rsqrt %30 : vector<10x1xf32>
    %32 = vector.broadcast %31 : vector<10x1xf32> to vector<10x32xf32>
    %33 = arith.mulf %28, %32 : vector<10x32xf32>
    %34 = vector.broadcast %14 : vector<1x32xf32> to vector<10x32xf32>
    %35 = arith.mulf %33, %34 : vector<10x32xf32>
    %36 = vector.broadcast %15 : vector<1x32xf32> to vector<10x32xf32>
    %37 = arith.addf %35, %36 : vector<10x32xf32>
    %c0_16 = arith.constant 0 : index
    %c0_17 = arith.constant 0 : index
    %38 = vector.load %arg6[%c0_16, %c0_17] : memref<1x32xf32, #tpu.memory_space<vmem>>, vector<1x32xf32>
    %c0_18 = arith.constant 0 : index
    %c0_19 = arith.constant 0 : index
    %39 = vector.load %arg7[%c0_18, %c0_19] : memref<1x32xf32, #tpu.memory_space<vmem>>, vector<1x32xf32>
    %cst_20 = arith.constant dense<0.000000e+00> : vector<10xf32>
    %40 = vector.multi_reduction <add>, %37, %cst_20 [1] : vector<10x32xf32> to vector<10xf32>
    %41 = vector.shape_cast %40 : vector<10xf32> to vector<10x1xf32>
    %cst_21 = arith.constant 3.200000e+01 : f32
    %42 = vector.broadcast %cst_21 : f32 to vector<10x1xf32>
    %43 = arith.divf %41, %42 : vector<10x1xf32>
    %44 = vector.broadcast %43 : vector<10x1xf32> to vector<10x32xf32>
    %45 = arith.subf %37, %44 : vector<10x32xf32>
    %46 = arith.mulf %45, %45 : vector<10x32xf32>
    %cst_22 = arith.constant dense<0.000000e+00> : vector<10xf32>
    %47 = vector.multi_reduction <add>, %46, %cst_22 [1] : vector<10x32xf32> to vector<10xf32>
    %48 = vector.shape_cast %47 : vector<10xf32> to vector<10x1xf32>
    %cst_23 = arith.constant 3.200000e+01 : f32
    %49 = vector.broadcast %cst_23 : f32 to vector<10x1xf32>
    %50 = arith.divf %48, %49 : vector<10x1xf32>
    %51 = vector.broadcast %43 : vector<10x1xf32> to vector<10x32xf32>
    %52 = arith.subf %37, %51 : vector<10x32xf32>
    %cst_24 = arith.constant 9.99999974E-6 : f32
    %53 = vector.broadcast %cst_24 : f32 to vector<10x1xf32>
    %54 = arith.addf %50, %53 : vector<10x1xf32>
    %55 = math.rsqrt %54 : vector<10x1xf32>
    %56 = vector.broadcast %55 : vector<10x1xf32> to vector<10x32xf32>
    %57 = arith.mulf %52, %56 : vector<10x32xf32>
    %58 = vector.broadcast %38 : vector<1x32xf32> to vector<10x32xf32>
    %59 = arith.mulf %57, %58 : vector<10x32xf32>
    %60 = vector.broadcast %39 : vector<1x32xf32> to vector<10x32xf32>
    %61 = arith.addf %59, %60 : vector<10x32xf32>
    %c0_25 = arith.constant 0 : index
    %c0_26 = arith.constant 0 : index
    %62 = vector.load %arg8[%c0_25, %c0_26] : memref<32x96xbf16, #tpu.memory_space<vmem>>, vector<32x96xbf16>
    %63 = arith.truncf %61 : vector<10x32xf32> to vector<10x32xbf16>
    %cst_27 = arith.constant dense<0.000000e+00> : vector<10x96xf32>
    %64 = tpu.matmul %63, %62, %cst_27 {dimension_numbers = #tpu.dot_dimension_numbers<[1], [0], [0], [1], [0, 0, 1, 1], [], []>} : vector<10x32xbf16>, vector<32x96xbf16>, vector<10x96xf32> -> vector<10x96xf32>
    %c0_28 = arith.constant 0 : index
    %c0_29 = arith.constant 0 : index
    %65 = vector.load %arg9[%c0_28, %c0_29] : memref<1x96xf32, #tpu.memory_space<vmem>>, vector<1x96xf32>
    %66 = vector.broadcast %65 : vector<1x96xf32> to vector<10x96xf32>
    %67 = arith.addf %64, %66 : vector<10x96xf32>
    %68 = vector.extract_strided_slice %67 {offsets = [0, 0], sizes = [10, 32], strides = [1, 1]} : vector<10x96xf32> to vector<10x32xf32>
    %69 = vector.extract_strided_slice %67 {offsets = [0, 32], sizes = [10, 32], strides = [1, 1]} : vector<10x96xf32> to vector<10x32xf32>
    %70 = vector.extract_strided_slice %67 {offsets = [0, 64], sizes = [10, 32], strides = [1, 1]} : vector<10x96xf32> to vector<10x32xf32>
    %71 = vector.extract_strided_slice %68 {offsets = [0, 0], sizes = [5, 32], strides = [1, 1]} : vector<10x32xf32> to vector<5x32xf32>
    %72 = vector.extract_strided_slice %69 {offsets = [0, 0], sizes = [5, 32], strides = [1, 1]} : vector<10x32xf32> to vector<5x32xf32>
    %73 = vector.extract_strided_slice %70 {offsets = [0, 0], sizes = [5, 32], strides = [1, 1]} : vector<10x32xf32> to vector<5x32xf32>
    %74 = vector.extract_strided_slice %71 {offsets = [0, 0], sizes = [5, 8], strides = [1, 1]} : vector<5x32xf32> to vector<5x8xf32>
    %75 = arith.truncf %74 : vector<5x8xf32> to vector<5x8xbf16>
    %76 = vector.extract_strided_slice %72 {offsets = [0, 0], sizes = [5, 8], strides = [1, 1]} : vector<5x32xf32> to vector<5x8xf32>
    %77 = arith.truncf %76 : vector<5x8xf32> to vector<5x8xbf16>
    %78 = vector.extract_strided_slice %73 {offsets = [0, 0], sizes = [5, 8], strides = [1, 1]} : vector<5x32xf32> to vector<5x8xf32>
    %79 = arith.truncf %78 : vector<5x8xf32> to vector<5x8xbf16>
    %cst_30 = arith.constant dense<0.000000e+00> : vector<5x5xf32>
    %80 = tpu.matmul %75, %77, %cst_30 {dimension_numbers = #tpu.dot_dimension_numbers<[1], [1], [0], [0], [0, 0, 1, 0], [], []>} : vector<5x8xbf16>, vector<5x8xbf16>, vector<5x5xf32> -> vector<5x5xf32>
    %cst_31 = arith.constant 0.353553385 : f32
    %81 = vector.broadcast %cst_31 : f32 to vector<5x5xf32>
    %82 = arith.mulf %80, %81 : vector<5x5xf32>
    %cst_32 = arith.constant dense<0xFF800000> : vector<5xf32>
    %83 = vector.multi_reduction <maximumf>, %82, %cst_32 [1] : vector<5x5xf32> to vector<5xf32>
    %84 = vector.shape_cast %83 : vector<5xf32> to vector<5x1xf32>
    %85 = vector.broadcast %84 : vector<5x1xf32> to vector<5x5xf32>
    %86 = arith.subf %82, %85 : vector<5x5xf32>
    %87 = math.exp %86 : vector<5x5xf32>
    %cst_33 = arith.constant dense<0.000000e+00> : vector<5xf32>
    %88 = vector.multi_reduction <add>, %87, %cst_33 [1] : vector<5x5xf32> to vector<5xf32>
    %89 = vector.shape_cast %88 : vector<5xf32> to vector<5x1xf32>
    %90 = vector.broadcast %89 : vector<5x1xf32> to vector<5x5xf32>
    %91 = arith.divf %87, %90 : vector<5x5xf32>
    %92 = arith.truncf %91 : vector<5x5xf32> to vector<5x5xbf16>
    %cst_34 = arith.constant dense<0.000000e+00> : vector<5x8xf32>
    %93 = tpu.matmul %92, %79, %cst_34 {dimension_numbers = #tpu.dot_dimension_numbers<[1], [0], [0], [1], [0, 0, 1, 1], [], []>} : vector<5x5xbf16>, vector<5x8xbf16>, vector<5x8xf32> -> vector<5x8xf32>
    %94 = vector.extract_strided_slice %71 {offsets = [0, 8], sizes = [5, 8], strides = [1, 1]} : vector<5x32xf32> to vector<5x8xf32>
    %95 = arith.truncf %94 : vector<5x8xf32> to vector<5x8xbf16>
    %96 = vector.extract_strided_slice %72 {offsets = [0, 8], sizes = [5, 8], strides = [1, 1]} : vector<5x32xf32> to vector<5x8xf32>
    %97 = arith.truncf %96 : vector<5x8xf32> to vector<5x8xbf16>
    %98 = vector.extract_strided_slice %73 {offsets = [0, 8], sizes = [5, 8], strides = [1, 1]} : vector<5x32xf32> to vector<5x8xf32>
    %99 = arith.truncf %98 : vector<5x8xf32> to vector<5x8xbf16>
    %cst_35 = arith.constant dense<0.000000e+00> : vector<5x5xf32>
    %100 = tpu.matmul %95, %97, %cst_35 {dimension_numbers = #tpu.dot_dimension_numbers<[1], [1], [0], [0], [0, 0, 1, 0], [], []>} : vector<5x8xbf16>, vector<5x8xbf16>, vector<5x5xf32> -> vector<5x5xf32>
    %cst_36 = arith.constant 0.353553385 : f32
    %101 = vector.broadcast %cst_36 : f32 to vector<5x5xf32>
    %102 = arith.mulf %100, %101 : vector<5x5xf32>
    %cst_37 = arith.constant dense<0xFF800000> : vector<5xf32>
    %103 = vector.multi_reduction <maximumf>, %102, %cst_37 [1] : vector<5x5xf32> to vector<5xf32>
    %104 = vector.shape_cast %103 : vector<5xf32> to vector<5x1xf32>
    %105 = vector.broadcast %104 : vector<5x1xf32> to vector<5x5xf32>
    %106 = arith.subf %102, %105 : vector<5x5xf32>
    %107 = math.exp %106 : vector<5x5xf32>
    %cst_38 = arith.constant dense<0.000000e+00> : vector<5xf32>
    %108 = vector.multi_reduction <add>, %107, %cst_38 [1] : vector<5x5xf32> to vector<5xf32>
    %109 = vector.shape_cast %108 : vector<5xf32> to vector<5x1xf32>
    %110 = vector.broadcast %109 : vector<5x1xf32> to vector<5x5xf32>
    %111 = arith.divf %107, %110 : vector<5x5xf32>
    %112 = arith.truncf %111 : vector<5x5xf32> to vector<5x5xbf16>
    %cst_39 = arith.constant dense<0.000000e+00> : vector<5x8xf32>
    %113 = tpu.matmul %112, %99, %cst_39 {dimension_numbers = #tpu.dot_dimension_numbers<[1], [0], [0], [1], [0, 0, 1, 1], [], []>} : vector<5x5xbf16>, vector<5x8xbf16>, vector<5x8xf32> -> vector<5x8xf32>
    %114 = vector.extract_strided_slice %71 {offsets = [0, 16], sizes = [5, 8], strides = [1, 1]} : vector<5x32xf32> to vector<5x8xf32>
    %115 = arith.truncf %114 : vector<5x8xf32> to vector<5x8xbf16>
    %116 = vector.extract_strided_slice %72 {offsets = [0, 16], sizes = [5, 8], strides = [1, 1]} : vector<5x32xf32> to vector<5x8xf32>
    %117 = arith.truncf %116 : vector<5x8xf32> to vector<5x8xbf16>
    %118 = vector.extract_strided_slice %73 {offsets = [0, 16], sizes = [5, 8], strides = [1, 1]} : vector<5x32xf32> to vector<5x8xf32>
    %119 = arith.truncf %118 : vector<5x8xf32> to vector<5x8xbf16>
    %cst_40 = arith.constant dense<0.000000e+00> : vector<5x5xf32>
    %120 = tpu.matmul %115, %117, %cst_40 {dimension_numbers = #tpu.dot_dimension_numbers<[1], [1], [0], [0], [0, 0, 1, 0], [], []>} : vector<5x8xbf16>, vector<5x8xbf16>, vector<5x5xf32> -> vector<5x5xf32>
    %cst_41 = arith.constant 0.353553385 : f32
    %121 = vector.broadcast %cst_41 : f32 to vector<5x5xf32>
    %122 = arith.mulf %120, %121 : vector<5x5xf32>
    %cst_42 = arith.constant dense<0xFF800000> : vector<5xf32>
    %123 = vector.multi_reduction <maximumf>, %122, %cst_42 [1] : vector<5x5xf32> to vector<5xf32>
    %124 = vector.shape_cast %123 : vector<5xf32> to vector<5x1xf32>
    %125 = vector.broadcast %124 : vector<5x1xf32> to vector<5x5xf32>
    %126 = arith.subf %122, %125 : vector<5x5xf32>
    %127 = math.exp %126 : vector<5x5xf32>
    %cst_43 = arith.constant dense<0.000000e+00> : vector<5xf32>
    %128 = vector.multi_reduction <add>, %127, %cst_43 [1] : vector<5x5xf32> to vector<5xf32>
    %129 = vector.shape_cast %128 : vector<5xf32> to vector<5x1xf32>
    %130 = vector.broadcast %129 : vector<5x1xf32> to vector<5x5xf32>
    %131 = arith.divf %127, %130 : vector<5x5xf32>
    %132 = arith.truncf %131 : vector<5x5xf32> to vector<5x5xbf16>
    %cst_44 = arith.constant dense<0.000000e+00> : vector<5x8xf32>
    %133 = tpu.matmul %132, %119, %cst_44 {dimension_numbers = #tpu.dot_dimension_numbers<[1], [0], [0], [1], [0, 0, 1, 1], [], []>} : vector<5x5xbf16>, vector<5x8xbf16>, vector<5x8xf32> -> vector<5x8xf32>
    %134 = vector.extract_strided_slice %71 {offsets = [0, 24], sizes = [5, 8], strides = [1, 1]} : vector<5x32xf32> to vector<5x8xf32>
    %135 = arith.truncf %134 : vector<5x8xf32> to vector<5x8xbf16>
    %136 = vector.extract_strided_slice %72 {offsets = [0, 24], sizes = [5, 8], strides = [1, 1]} : vector<5x32xf32> to vector<5x8xf32>
    %137 = arith.truncf %136 : vector<5x8xf32> to vector<5x8xbf16>
    %138 = vector.extract_strided_slice %73 {offsets = [0, 24], sizes = [5, 8], strides = [1, 1]} : vector<5x32xf32> to vector<5x8xf32>
    %139 = arith.truncf %138 : vector<5x8xf32> to vector<5x8xbf16>
    %cst_45 = arith.constant dense<0.000000e+00> : vector<5x5xf32>
    %140 = tpu.matmul %135, %137, %cst_45 {dimension_numbers = #tpu.dot_dimension_numbers<[1], [1], [0], [0], [0, 0, 1, 0], [], []>} : vector<5x8xbf16>, vector<5x8xbf16>, vector<5x5xf32> -> vector<5x5xf32>
    %cst_46 = arith.constant 0.353553385 : f32
    %141 = vector.broadcast %cst_46 : f32 to vector<5x5xf32>
    %142 = arith.mulf %140, %141 : vector<5x5xf32>
    %cst_47 = arith.constant dense<0xFF800000> : vector<5xf32>
    %143 = vector.multi_reduction <maximumf>, %142, %cst_47 [1] : vector<5x5xf32> to vector<5xf32>
    %144 = vector.shape_cast %143 : vector<5xf32> to vector<5x1xf32>
    %145 = vector.broadcast %144 : vector<5x1xf32> to vector<5x5xf32>
    %146 = arith.subf %142, %145 : vector<5x5xf32>
    %147 = math.exp %146 : vector<5x5xf32>
    %cst_48 = arith.constant dense<0.000000e+00> : vector<5xf32>
    %148 = vector.multi_reduction <add>, %147, %cst_48 [1] : vector<5x5xf32> to vector<5xf32>
    %149 = vector.shape_cast %148 : vector<5xf32> to vector<5x1xf32>
    %150 = vector.broadcast %149 : vector<5x1xf32> to vector<5x5xf32>
    %151 = arith.divf %147, %150 : vector<5x5xf32>
    %152 = arith.truncf %151 : vector<5x5xf32> to vector<5x5xbf16>
    %cst_49 = arith.constant dense<0.000000e+00> : vector<5x8xf32>
    %153 = tpu.matmul %152, %139, %cst_49 {dimension_numbers = #tpu.dot_dimension_numbers<[1], [0], [0], [1], [0, 0, 1, 1], [], []>} : vector<5x5xbf16>, vector<5x8xbf16>, vector<5x8xf32> -> vector<5x8xf32>
    %154 = tpu.concatenate %93, %113, %133, %153 in 1 : vector<5x8xf32>, vector<5x8xf32>, vector<5x8xf32>, vector<5x8xf32> -> vector<5x32xf32>
    %155 = vector.extract_strided_slice %68 {offsets = [5, 0], sizes = [5, 32], strides = [1, 1]} : vector<10x32xf32> to vector<5x32xf32>
    %156 = vector.extract_strided_slice %69 {offsets = [5, 0], sizes = [5, 32], strides = [1, 1]} : vector<10x32xf32> to vector<5x32xf32>
    %157 = vector.extract_strided_slice %70 {offsets = [5, 0], sizes = [5, 32], strides = [1, 1]} : vector<10x32xf32> to vector<5x32xf32>
    %158 = vector.extract_strided_slice %155 {offsets = [0, 0], sizes = [5, 8], strides = [1, 1]} : vector<5x32xf32> to vector<5x8xf32>
    %159 = arith.truncf %158 : vector<5x8xf32> to vector<5x8xbf16>
    %160 = vector.extract_strided_slice %156 {offsets = [0, 0], sizes = [5, 8], strides = [1, 1]} : vector<5x32xf32> to vector<5x8xf32>
    %161 = arith.truncf %160 : vector<5x8xf32> to vector<5x8xbf16>
    %162 = vector.extract_strided_slice %157 {offsets = [0, 0], sizes = [5, 8], strides = [1, 1]} : vector<5x32xf32> to vector<5x8xf32>
    %163 = arith.truncf %162 : vector<5x8xf32> to vector<5x8xbf16>
    %cst_50 = arith.constant dense<0.000000e+00> : vector<5x5xf32>
    %164 = tpu.matmul %159, %161, %cst_50 {dimension_numbers = #tpu.dot_dimension_numbers<[1], [1], [0], [0], [0, 0, 1, 0], [], []>} : vector<5x8xbf16>, vector<5x8xbf16>, vector<5x5xf32> -> vector<5x5xf32>
    %cst_51 = arith.constant 0.353553385 : f32
    %165 = vector.broadcast %cst_51 : f32 to vector<5x5xf32>
    %166 = arith.mulf %164, %165 : vector<5x5xf32>
    %cst_52 = arith.constant dense<0xFF800000> : vector<5xf32>
    %167 = vector.multi_reduction <maximumf>, %166, %cst_52 [1] : vector<5x5xf32> to vector<5xf32>
    %168 = vector.shape_cast %167 : vector<5xf32> to vector<5x1xf32>
    %169 = vector.broadcast %168 : vector<5x1xf32> to vector<5x5xf32>
    %170 = arith.subf %166, %169 : vector<5x5xf32>
    %171 = math.exp %170 : vector<5x5xf32>
    %cst_53 = arith.constant dense<0.000000e+00> : vector<5xf32>
    %172 = vector.multi_reduction <add>, %171, %cst_53 [1] : vector<5x5xf32> to vector<5xf32>
    %173 = vector.shape_cast %172 : vector<5xf32> to vector<5x1xf32>
    %174 = vector.broadcast %173 : vector<5x1xf32> to vector<5x5xf32>
    %175 = arith.divf %171, %174 : vector<5x5xf32>
    %176 = arith.truncf %175 : vector<5x5xf32> to vector<5x5xbf16>
    %cst_54 = arith.constant dense<0.000000e+00> : vector<5x8xf32>
    %177 = tpu.matmul %176, %163, %cst_54 {dimension_numbers = #tpu.dot_dimension_numbers<[1], [0], [0], [1], [0, 0, 1, 1], [], []>} : vector<5x5xbf16>, vector<5x8xbf16>, vector<5x8xf32> -> vector<5x8xf32>
    %178 = vector.extract_strided_slice %155 {offsets = [0, 8], sizes = [5, 8], strides = [1, 1]} : vector<5x32xf32> to vector<5x8xf32>
    %179 = arith.truncf %178 : vector<5x8xf32> to vector<5x8xbf16>
    %180 = vector.extract_strided_slice %156 {offsets = [0, 8], sizes = [5, 8], strides = [1, 1]} : vector<5x32xf32> to vector<5x8xf32>
    %181 = arith.truncf %180 : vector<5x8xf32> to vector<5x8xbf16>
    %182 = vector.extract_strided_slice %157 {offsets = [0, 8], sizes = [5, 8], strides = [1, 1]} : vector<5x32xf32> to vector<5x8xf32>
    %183 = arith.truncf %182 : vector<5x8xf32> to vector<5x8xbf16>
    %cst_55 = arith.constant dense<0.000000e+00> : vector<5x5xf32>
    %184 = tpu.matmul %179, %181, %cst_55 {dimension_numbers = #tpu.dot_dimension_numbers<[1], [1], [0], [0], [0, 0, 1, 0], [], []>} : vector<5x8xbf16>, vector<5x8xbf16>, vector<5x5xf32> -> vector<5x5xf32>
    %cst_56 = arith.constant 0.353553385 : f32
    %185 = vector.broadcast %cst_56 : f32 to vector<5x5xf32>
    %186 = arith.mulf %184, %185 : vector<5x5xf32>
    %cst_57 = arith.constant dense<0xFF800000> : vector<5xf32>
    %187 = vector.multi_reduction <maximumf>, %186, %cst_57 [1] : vector<5x5xf32> to vector<5xf32>
    %188 = vector.shape_cast %187 : vector<5xf32> to vector<5x1xf32>
    %189 = vector.broadcast %188 : vector<5x1xf32> to vector<5x5xf32>
    %190 = arith.subf %186, %189 : vector<5x5xf32>
    %191 = math.exp %190 : vector<5x5xf32>
    %cst_58 = arith.constant dense<0.000000e+00> : vector<5xf32>
    %192 = vector.multi_reduction <add>, %191, %cst_58 [1] : vector<5x5xf32> to vector<5xf32>
    %193 = vector.shape_cast %192 : vector<5xf32> to vector<5x1xf32>
    %194 = vector.broadcast %193 : vector<5x1xf32> to vector<5x5xf32>
    %195 = arith.divf %191, %194 : vector<5x5xf32>
    %196 = arith.truncf %195 : vector<5x5xf32> to vector<5x5xbf16>
    %cst_59 = arith.constant dense<0.000000e+00> : vector<5x8xf32>
    %197 = tpu.matmul %196, %183, %cst_59 {dimension_numbers = #tpu.dot_dimension_numbers<[1], [0], [0], [1], [0, 0, 1, 1], [], []>} : vector<5x5xbf16>, vector<5x8xbf16>, vector<5x8xf32> -> vector<5x8xf32>
    %198 = vector.extract_strided_slice %155 {offsets = [0, 16], sizes = [5, 8], strides = [1, 1]} : vector<5x32xf32> to vector<5x8xf32>
    %199 = arith.truncf %198 : vector<5x8xf32> to vector<5x8xbf16>
    %200 = vector.extract_strided_slice %156 {offsets = [0, 16], sizes = [5, 8], strides = [1, 1]} : vector<5x32xf32> to vector<5x8xf32>
    %201 = arith.truncf %200 : vector<5x8xf32> to vector<5x8xbf16>
    %202 = vector.extract_strided_slice %157 {offsets = [0, 16], sizes = [5, 8], strides = [1, 1]} : vector<5x32xf32> to vector<5x8xf32>
    %203 = arith.truncf %202 : vector<5x8xf32> to vector<5x8xbf16>
    %cst_60 = arith.constant dense<0.000000e+00> : vector<5x5xf32>
    %204 = tpu.matmul %199, %201, %cst_60 {dimension_numbers = #tpu.dot_dimension_numbers<[1], [1], [0], [0], [0, 0, 1, 0], [], []>} : vector<5x8xbf16>, vector<5x8xbf16>, vector<5x5xf32> -> vector<5x5xf32>
    %cst_61 = arith.constant 0.353553385 : f32
    %205 = vector.broadcast %cst_61 : f32 to vector<5x5xf32>
    %206 = arith.mulf %204, %205 : vector<5x5xf32>
    %cst_62 = arith.constant dense<0xFF800000> : vector<5xf32>
    %207 = vector.multi_reduction <maximumf>, %206, %cst_62 [1] : vector<5x5xf32> to vector<5xf32>
    %208 = vector.shape_cast %207 : vector<5xf32> to vector<5x1xf32>
    %209 = vector.broadcast %208 : vector<5x1xf32> to vector<5x5xf32>
    %210 = arith.subf %206, %209 : vector<5x5xf32>
    %211 = math.exp %210 : vector<5x5xf32>
    %cst_63 = arith.constant dense<0.000000e+00> : vector<5xf32>
    %212 = vector.multi_reduction <add>, %211, %cst_63 [1] : vector<5x5xf32> to vector<5xf32>
    %213 = vector.shape_cast %212 : vector<5xf32> to vector<5x1xf32>
    %214 = vector.broadcast %213 : vector<5x1xf32> to vector<5x5xf32>
    %215 = arith.divf %211, %214 : vector<5x5xf32>
    %216 = arith.truncf %215 : vector<5x5xf32> to vector<5x5xbf16>
    %cst_64 = arith.constant dense<0.000000e+00> : vector<5x8xf32>
    %217 = tpu.matmul %216, %203, %cst_64 {dimension_numbers = #tpu.dot_dimension_numbers<[1], [0], [0], [1], [0, 0, 1, 1], [], []>} : vector<5x5xbf16>, vector<5x8xbf16>, vector<5x8xf32> -> vector<5x8xf32>
    %218 = vector.extract_strided_slice %155 {offsets = [0, 24], sizes = [5, 8], strides = [1, 1]} : vector<5x32xf32> to vector<5x8xf32>
    %219 = arith.truncf %218 : vector<5x8xf32> to vector<5x8xbf16>
    %220 = vector.extract_strided_slice %156 {offsets = [0, 24], sizes = [5, 8], strides = [1, 1]} : vector<5x32xf32> to vector<5x8xf32>
    %221 = arith.truncf %220 : vector<5x8xf32> to vector<5x8xbf16>
    %222 = vector.extract_strided_slice %157 {offsets = [0, 24], sizes = [5, 8], strides = [1, 1]} : vector<5x32xf32> to vector<5x8xf32>
    %223 = arith.truncf %222 : vector<5x8xf32> to vector<5x8xbf16>
    %cst_65 = arith.constant dense<0.000000e+00> : vector<5x5xf32>
    %224 = tpu.matmul %219, %221, %cst_65 {dimension_numbers = #tpu.dot_dimension_numbers<[1], [1], [0], [0], [0, 0, 1, 0], [], []>} : vector<5x8xbf16>, vector<5x8xbf16>, vector<5x5xf32> -> vector<5x5xf32>
    %cst_66 = arith.constant 0.353553385 : f32
    %225 = vector.broadcast %cst_66 : f32 to vector<5x5xf32>
    %226 = arith.mulf %224, %225 : vector<5x5xf32>
    %cst_67 = arith.constant dense<0xFF800000> : vector<5xf32>
    %227 = vector.multi_reduction <maximumf>, %226, %cst_67 [1] : vector<5x5xf32> to vector<5xf32>
    %228 = vector.shape_cast %227 : vector<5xf32> to vector<5x1xf32>
    %229 = vector.broadcast %228 : vector<5x1xf32> to vector<5x5xf32>
    %230 = arith.subf %226, %229 : vector<5x5xf32>
    %231 = math.exp %230 : vector<5x5xf32>
    %cst_68 = arith.constant dense<0.000000e+00> : vector<5xf32>
    %232 = vector.multi_reduction <add>, %231, %cst_68 [1] : vector<5x5xf32> to vector<5xf32>
    %233 = vector.shape_cast %232 : vector<5xf32> to vector<5x1xf32>
    %234 = vector.broadcast %233 : vector<5x1xf32> to vector<5x5xf32>
    %235 = arith.divf %231, %234 : vector<5x5xf32>
    %236 = arith.truncf %235 : vector<5x5xf32> to vector<5x5xbf16>
    %cst_69 = arith.constant dense<0.000000e+00> : vector<5x8xf32>
    %237 = tpu.matmul %236, %223, %cst_69 {dimension_numbers = #tpu.dot_dimension_numbers<[1], [0], [0], [1], [0, 0, 1, 1], [], []>} : vector<5x5xbf16>, vector<5x8xbf16>, vector<5x8xf32> -> vector<5x8xf32>
    %238 = tpu.concatenate %177, %197, %217, %237 in 1 : vector<5x8xf32>, vector<5x8xf32>, vector<5x8xf32>, vector<5x8xf32> -> vector<5x32xf32>
    %239 = tpu.concatenate %154, %238 in 0 : vector<5x32xf32>, vector<5x32xf32> -> vector<10x32xf32>
    %c0_70 = arith.constant 0 : index
    %c0_71 = arith.constant 0 : index
    %240 = vector.load %arg10[%c0_70, %c0_71] : memref<32x32xbf16, #tpu.memory_space<vmem>>, vector<32x32xbf16>
    %241 = arith.truncf %239 : vector<10x32xf32> to vector<10x32xbf16>
    %cst_72 = arith.constant dense<0.000000e+00> : vector<10x32xf32>
    %242 = tpu.matmul %241, %240, %cst_72 {dimension_numbers = #tpu.dot_dimension_numbers<[1], [0], [0], [1], [0, 0, 1, 1], [], []>} : vector<10x32xbf16>, vector<32x32xbf16>, vector<10x32xf32> -> vector<10x32xf32>
    %c0_73 = arith.constant 0 : index
    %c0_74 = arith.constant 0 : index
    %243 = vector.load %arg11[%c0_73, %c0_74] : memref<1x32xf32, #tpu.memory_space<vmem>>, vector<1x32xf32>
    %244 = vector.broadcast %243 : vector<1x32xf32> to vector<10x32xf32>
    %245 = arith.addf %242, %244 : vector<10x32xf32>
    %246 = arith.addf %37, %245 : vector<10x32xf32>
    %c0_75 = arith.constant 0 : index
    %c0_76 = arith.constant 0 : index
    %247 = vector.load %arg12[%c0_75, %c0_76] : memref<1x32xf32, #tpu.memory_space<vmem>>, vector<1x32xf32>
    %c0_77 = arith.constant 0 : index
    %c0_78 = arith.constant 0 : index
    %248 = vector.load %arg13[%c0_77, %c0_78] : memref<1x32xf32, #tpu.memory_space<vmem>>, vector<1x32xf32>
    %cst_79 = arith.constant dense<0.000000e+00> : vector<10xf32>
    %249 = vector.multi_reduction <add>, %246, %cst_79 [1] : vector<10x32xf32> to vector<10xf32>
    %250 = vector.shape_cast %249 : vector<10xf32> to vector<10x1xf32>
    %cst_80 = arith.constant 3.200000e+01 : f32
    %251 = vector.broadcast %cst_80 : f32 to vector<10x1xf32>
    %252 = arith.divf %250, %251 : vector<10x1xf32>
    %253 = vector.broadcast %252 : vector<10x1xf32> to vector<10x32xf32>
    %254 = arith.subf %246, %253 : vector<10x32xf32>
    %255 = arith.mulf %254, %254 : vector<10x32xf32>
    %cst_81 = arith.constant dense<0.000000e+00> : vector<10xf32>
    %256 = vector.multi_reduction <add>, %255, %cst_81 [1] : vector<10x32xf32> to vector<10xf32>
    %257 = vector.shape_cast %256 : vector<10xf32> to vector<10x1xf32>
    %cst_82 = arith.constant 3.200000e+01 : f32
    %258 = vector.broadcast %cst_82 : f32 to vector<10x1xf32>
    %259 = arith.divf %257, %258 : vector<10x1xf32>
    %260 = vector.broadcast %252 : vector<10x1xf32> to vector<10x32xf32>
    %261 = arith.subf %246, %260 : vector<10x32xf32>
    %cst_83 = arith.constant 9.99999974E-6 : f32
    %262 = vector.broadcast %cst_83 : f32 to vector<10x1xf32>
    %263 = arith.addf %259, %262 : vector<10x1xf32>
    %264 = math.rsqrt %263 : vector<10x1xf32>
    %265 = vector.broadcast %264 : vector<10x1xf32> to vector<10x32xf32>
    %266 = arith.mulf %261, %265 : vector<10x32xf32>
    %267 = vector.broadcast %247 : vector<1x32xf32> to vector<10x32xf32>
    %268 = arith.mulf %266, %267 : vector<10x32xf32>
    %269 = vector.broadcast %248 : vector<1x32xf32> to vector<10x32xf32>
    %270 = arith.addf %268, %269 : vector<10x32xf32>
    %c0_84 = arith.constant 0 : index
    %c0_85 = arith.constant 0 : index
    %271 = vector.load %arg14[%c0_84, %c0_85] : memref<32x64xbf16, #tpu.memory_space<vmem>>, vector<32x64xbf16>
    %272 = arith.truncf %270 : vector<10x32xf32> to vector<10x32xbf16>
    %cst_86 = arith.constant dense<0.000000e+00> : vector<10x64xf32>
    %273 = tpu.matmul %272, %271, %cst_86 {dimension_numbers = #tpu.dot_dimension_numbers<[1], [0], [0], [1], [0, 0, 1, 1], [], []>} : vector<10x32xbf16>, vector<32x64xbf16>, vector<10x64xf32> -> vector<10x64xf32>
    %c0_87 = arith.constant 0 : index
    %c0_88 = arith.constant 0 : index
    %274 = vector.load %arg15[%c0_87, %c0_88] : memref<1x64xf32, #tpu.memory_space<vmem>>, vector<1x64xf32>
    %275 = vector.broadcast %274 : vector<1x64xf32> to vector<10x64xf32>
    %276 = arith.addf %273, %275 : vector<10x64xf32>
    %cst_89 = arith.constant 1.702000e+00 : f32
    %277 = vector.broadcast %cst_89 : f32 to vector<10x64xf32>
    %278 = arith.mulf %277, %276 : vector<10x64xf32>
    %279 = arith.negf %278 : vector<10x64xf32>
    %280 = math.exp %279 : vector<10x64xf32>
    %cst_90 = arith.constant 1.000000e+00 : f32
    %281 = vector.broadcast %cst_90 : f32 to vector<10x64xf32>
    %282 = arith.addf %281, %280 : vector<10x64xf32>
    %283 = arith.divf %281, %282 : vector<10x64xf32>
    %284 = arith.mulf %276, %283 : vector<10x64xf32>
    %c0_91 = arith.constant 0 : index
    %c0_92 = arith.constant 0 : index
    %285 = vector.load %arg16[%c0_91, %c0_92] : memref<64x32xbf16, #tpu.memory_space<vmem>>, vector<64x32xbf16>
    %286 = arith.truncf %284 : vector<10x64xf32> to vector<10x64xbf16>
    %cst_93 = arith.constant dense<0.000000e+00> : vector<10x32xf32>
    %287 = tpu.matmul %286, %285, %cst_93 {dimension_numbers = #tpu.dot_dimension_numbers<[1], [0], [0], [1], [0, 0, 1, 1], [], []>} : vector<10x64xbf16>, vector<64x32xbf16>, vector<10x32xf32> -> vector<10x32xf32>
    %c0_94 = arith.constant 0 : index
    %c0_95 = arith.constant 0 : index
    %288 = vector.load %arg17[%c0_94, %c0_95] : memref<1x32xf32, #tpu.memory_space<vmem>>, vector<1x32xf32>
    %289 = vector.broadcast %288 : vector<1x32xf32> to vector<10x32xf32>
    %290 = arith.addf %287, %289 : vector<10x32xf32>
    %291 = arith.addf %246, %290 : vector<10x32xf32>
    %292 = vector.extract_strided_slice %291 {offsets = [1, 0], sizes = [1, 32], strides = [1, 1]} : vector<10x32xf32> to vector<1x32xf32>
    %293 = vector.extract_strided_slice %291 {offsets = [2, 0], sizes = [1, 32], strides = [1, 1]} : vector<10x32xf32> to vector<1x32xf32>
    %294 = vector.extract_strided_slice %291 {offsets = [3, 0], sizes = [1, 32], strides = [1, 1]} : vector<10x32xf32> to vector<1x32xf32>
    %295 = vector.extract_strided_slice %291 {offsets = [4, 0], sizes = [1, 32], strides = [1, 1]} : vector<10x32xf32> to vector<1x32xf32>
    %296 = tpu.concatenate %292, %293, %294, %295 in 1 : vector<1x32xf32>, vector<1x32xf32>, vector<1x32xf32>, vector<1x32xf32> -> vector<1x128xf32>
    %297 = vector.extract_strided_slice %291 {offsets = [6, 0], sizes = [1, 32], strides = [1, 1]} : vector<10x32xf32> to vector<1x32xf32>
    %298 = vector.extract_strided_slice %291 {offsets = [7, 0], sizes = [1, 32], strides = [1, 1]} : vector<10x32xf32> to vector<1x32xf32>
    %299 = vector.extract_strided_slice %291 {offsets = [8, 0], sizes = [1, 32], strides = [1, 1]} : vector<10x32xf32> to vector<1x32xf32>
    %300 = vector.extract_strided_slice %291 {offsets = [9, 0], sizes = [1, 32], strides = [1, 1]} : vector<10x32xf32> to vector<1x32xf32>
    %301 = tpu.concatenate %297, %298, %299, %300 in 1 : vector<1x32xf32>, vector<1x32xf32>, vector<1x32xf32>, vector<1x32xf32> -> vector<1x128xf32>
    %302 = tpu.concatenate %296, %301 in 0 : vector<1x128xf32>, vector<1x128xf32> -> vector<2x128xf32>
    %c0_96 = arith.constant 0 : index
    %c0_97 = arith.constant 0 : index
    %303 = vector.load %arg18[%c0_96, %c0_97] : memref<2x128xf32, #tpu.memory_space<vmem>>, vector<2x128xf32>
    tpu.vector_store %arg18[%c0_96, %c0_97], %302 {strides = array<i32>} : memref<2x128xf32, #tpu.memory_space<vmem>>, vector<2x128xf32>,
    return
  }
}

</mosaic_0001>

<llo_original>
// kernel: clip_vision_tower_forward.1
$region0: #{clip_vision_tower_forward.1}
  #allocation0 [shape = 'u32[]', space=smem, size = 0x4, offset = 0x4, fixed_abs, tag = 'smem constant byte address 0x4 - core index']
  #allocation1 [shape = 'u32[144,128]{1,0:T(1,128)}', space=vmem, size = 0x12000, scoped, tag = 'internal scratch']
  %s0 = inlined_call_operand.vmem [shape: f32[8,192], index: 0, kind: input, shape index: {}]
  %s1 = inlined_call_operand.vmem [shape: bf16[192,32], index: 1, kind: input, shape index: {}]
  %s2 = inlined_call_operand.vmem [shape: f32[1,32], index: 2, kind: input, shape index: {}]
  %s3 = inlined_call_operand.vmem [shape: f32[5,32], index: 3, kind: input, shape index: {}]
  %s4 = inlined_call_operand.vmem [shape: f32[1,32], index: 4, kind: input, shape index: {}]
  %s5 = inlined_call_operand.vmem [shape: f32[1,32], index: 5, kind: input, shape index: {}]
  %s6 = inlined_call_operand.vmem [shape: f32[1,32], index: 6, kind: input, shape index: {}]
  %s7 = inlined_call_operand.vmem [shape: f32[1,32], index: 7, kind: input, shape index: {}]
  %s8 = inlined_call_operand.vmem [shape: bf16[32,96], index: 8, kind: input, shape index: {}]
  %s9 = inlined_call_operand.vmem [shape: f32[1,96], index: 9, kind: input, shape index: {}]
  %s10 = inlined_call_operand.vmem [shape: bf16[32,32], index: 10, kind: input, shape index: {}]
  %s11 = inlined_call_operand.vmem [shape: f32[1,32], index: 11, kind: input, shape index: {}]
  %s12 = inlined_call_operand.vmem [shape: f32[1,32], index: 12, kind: input, shape index: {}]
  %s13 = inlined_call_operand.vmem [shape: f32[1,32], index: 13, kind: input, shape index: {}]
  %s14 = inlined_call_operand.vmem [shape: bf16[32,64], index: 14, kind: input, shape index: {}]
  %s15 = inlined_call_operand.vmem [shape: f32[1,64], index: 15, kind: input, shape index: {}]
  %s16 = inlined_call_operand.vmem [shape: bf16[64,32], index: 16, kind: input, shape index: {}]
  %s17 = inlined_call_operand.vmem [shape: f32[1,32], index: 17, kind: input, shape index: {}]
  %s18 = inlined_call_operand.vmem [shape: f32[2,128], index: 18, kind: output, shape index: {}]
  %s19 = sld [smem:[#allocation0]]
  $region82: #{clip_vision_tower_forward.1} parent=0
    _
  %s21 = ssub.s32 1, %s19
  %s22 = scalar_select 0, %s21, %s19
  // Predicated region
  $region2: #{clip_vision_tower_forward.1} parent=0 // pred_check
    _
  $region3: #{clip_vision_tower_forward.1} parent=0 // pred_check_branch
    %24 = sbr.rel (0) target = $region5
  $region4: #{clip_vision_tower_forward.1} parent=0 // pred_region
    _
  $region5: #{clip_vision_tower_forward.1} parent=0 // pred_fallthru
    _
  // Predicated region
  $region6: #{clip_vision_tower_forward.1} parent=0 // pred_check
    _
  $region7: #{clip_vision_tower_forward.1} parent=0 // pred_check_branch
    %26 = sbr.rel (0) target = $region9
  $region8: #{clip_vision_tower_forward.1} parent=0 // pred_region
    _
  $region9: #{clip_vision_tower_forward.1} parent=0 // pred_fallthru
    _
  // Predicated region
  $region10: #{clip_vision_tower_forward.1} parent=0 // pred_check
    _
  $region11: #{clip_vision_tower_forward.1} parent=0 // pred_check_branch
    %28 = sbr.rel (0) target = $region13
  $region12: #{clip_vision_tower_forward.1} parent=0 // pred_region
    _
  $region13: #{clip_vision_tower_forward.1} parent=0 // pred_fallthru
    _
  // Predicated region
  $region14: #{clip_vision_tower_forward.1} parent=0 // pred_check
    _
  $region15: #{clip_vision_tower_forward.1} parent=0 // pred_check_branch
    %30 = sbr.rel (0) target = $region17
  $region16: #{clip_vision_tower_forward.1} parent=0 // pred_region
    _
  $region17: #{clip_vision_tower_forward.1} parent=0 // pred_fallthru
    _
  // Predicated region
  $region18: #{clip_vision_tower_forward.1} parent=0 // pred_check
    _
  $region19: #{clip_vision_tower_forward.1} parent=0 // pred_check_branch
    %32 = sbr.rel (0) target = $region21
  $region20: #{clip_vision_tower_forward.1} parent=0 // pred_region
    _
  $region21: #{clip_vision_tower_forward.1} parent=0 // pred_fallthru
    _
  // Predicated region
  $region22: #{clip_vision_tower_forward.1} parent=0 // pred_check
    _
  $region23: #{clip_vision_tower_forward.1} parent=0 // pred_check_branch
    %34 = sbr.rel (0) target = $region25
  $region24: #{clip_vision_tower_forward.1} parent=0 // pred_region
    _
  $region25: #{clip_vision_tower_forward.1} parent=0 // pred_fallthru
    _
  // Predicated region
  $region26: #{clip_vision_tower_forward.1} parent=0 // pred_check
    _
  $region27: #{clip_vision_tower_forward.1} parent=0 // pred_check_branch
    %36 = sbr.rel (0) target = $region29
  $region28: #{clip_vision_tower_forward.1} parent=0 // pred_region
    _
  $region29: #{clip_vision_tower_forward.1} parent=0 // pred_fallthru
    _
  // Predicated region
  $region30: #{clip_vision_tower_forward.1} parent=0 // pred_check
    _
  $region31: #{clip_vision_tower_forward.1} parent=0 // pred_check_branch
    %38 = sbr.rel (0) target = $region33
  $region32: #{clip_vision_tower_forward.1} parent=0 // pred_region
    _
  $region33: #{clip_vision_tower_forward.1} parent=0 // pred_fallthru
    _
  // Predicated region
  $region34: #{clip_vision_tower_forward.1} parent=0 // pred_check
    _
  $region35: #{clip_vision_tower_forward.1} parent=0 // pred_check_branch
    %40 = sbr.rel (0) target = $region37
  $region36: #{clip_vision_tower_forward.1} parent=0 // pred_region
    _
  $region37: #{clip_vision_tower_forward.1} parent=0 // pred_fallthru
    _
  // Predicated region
  $region38: #{clip_vision_tower_forward.1} parent=0 // pred_check
    _
  $region39: #{clip_vision_tower_forward.1} parent=0 // pred_check_branch
    %42 = sbr.rel (0) target = $region41
  $region40: #{clip_vision_tower_forward.1} parent=0 // pred_region
    _
  $region41: #{clip_vision_tower_forward.1} parent=0 // pred_fallthru
    _
  // Predicated region
  $region42: #{clip_vision_tower_forward.1} parent=0 // pred_check
    _
  $region43: #{clip_vision_tower_forward.1} parent=0 // pred_check_branch
    %44 = sbr.rel (0) target = $region45
  $region44: #{clip_vision_tower_forward.1} parent=0 // pred_region
    _
  $region45: #{clip_vision_tower_forward.1} parent=0 // pred_fallthru
    _
  // Predicated region
  $region46: #{clip_vision_tower_forward.1} parent=0 // pred_check
    _
  $region47: #{clip_vision_tower_forward.1} parent=0 // pred_check_branch
    %46 = sbr.rel (0) target = $region49
  $region48: #{clip_vision_tower_forward.1} parent=0 // pred_region
    _
  $region49: #{clip_vision_tower_forward.1} parent=0 // pred_fallthru
    _
  // Predicated region
  $region50: #{clip_vision_tower_forward.1} parent=0 // pred_check
    _
  $region51: #{clip_vision_tower_forward.1} parent=0 // pred_check_branch
    %48 = sbr.rel (0) target = $region53
  $region52: #{clip_vision_tower_forward.1} parent=0 // pred_region
    _
  $region53: #{clip_vision_tower_forward.1} parent=0 // pred_fallthru
    _
  // Predicated region
  $region54: #{clip_vision_tower_forward.1} parent=0 // pred_check
    _
  $region55: #{clip_vision_tower_forward.1} parent=0 // pred_check_branch
    %50 = sbr.rel (0) target = $region57
  $region56: #{clip_vision_tower_forward.1} parent=0 // pred_region
    _
  $region57: #{clip_vision_tower_forward.1} parent=0 // pred_fallthru
    _
  // Predicated region
  $region58: #{clip_vision_tower_forward.1} parent=0 // pred_check
    _
  $region59: #{clip_vision_tower_forward.1} parent=0 // pred_check_branch
    %52 = sbr.rel (0) target = $region61
  $region60: #{clip_vision_tower_forward.1} parent=0 // pred_region
    _
  $region61: #{clip_vision_tower_forward.1} parent=0 // pred_fallthru
    _
  // Predicated region
  $region62: #{clip_vision_tower_forward.1} parent=0 // pred_check
    _
  $region63: #{clip_vision_tower_forward.1} parent=0 // pred_check_branch
    %54 = sbr.rel (0) target = $region65
  $region64: #{clip_vision_tower_forward.1} parent=0 // pred_region
    _
  $region65: #{clip_vision_tower_forward.1} parent=0 // pred_fallthru
    _
  // Predicated region
  $region66: #{clip_vision_tower_forward.1} parent=0 // pred_check
    _
  $region67: #{clip_vision_tower_forward.1} parent=0 // pred_check_branch
    %56 = sbr.rel (0) target = $region69
  $region68: #{clip_vision_tower_forward.1} parent=0 // pred_region
    _
  $region69: #{clip_vision_tower_forward.1} parent=0 // pred_fallthru
    _
  // Predicated region
  $region70: #{clip_vision_tower_forward.1} parent=0 // pred_check
    _
  $region71: #{clip_vision_tower_forward.1} parent=0 // pred_check_branch
    %58 = sbr.rel (0) target = $region73
  $region72: #{clip_vision_tower_forward.1} parent=0 // pred_region
    _
  $region73: #{clip_vision_tower_forward.1} parent=0 // pred_fallthru
    _
  %v60 = vld [vmem:[%s0] sm:$0xff]
  %v61 = vld [vmem:[%s0 + $0x8] sm:$0xff]
  %v62 = vld [vmem:[%s1] sm:$0xf]
  %v63 = vld [vmem:[%s1 + $0x4] sm:$0xf]
  %v64 = vld [vmem:[%s1 + $0x8] sm:$0xf]
  %v65 = vld [vmem:[%s1 + $0xc] sm:$0xf]
  %v66 = vld [vmem:[%s1 + $0x10] sm:$0xf]
  %v67 = vld [vmem:[%s1 + $0x14] sm:$0xf]
  %v68 = vld [vmem:[%s1 + $0x18] sm:$0xf]
  %v69 = vld [vmem:[%s1 + $0x1c] sm:$0xf]
  %v70 = vld [vmem:[%s1 + $0x20] sm:$0xf]
  %v71 = vld [vmem:[%s1 + $0x24] sm:$0xf]
  %v72 = vld [vmem:[%s1 + $0x28] sm:$0xf]
  %v73 = vld [vmem:[%s1 + $0x2c] sm:$0xf]
  %v74 = vld [vmem:[%s1 + $0x30] sm:$0xf]
  %v75 = vld [vmem:[%s1 + $0x34] sm:$0xf]
  %v76 = vld [vmem:[%s1 + $0x38] sm:$0xf]
  %v77 = vld [vmem:[%s1 + $0x3c] sm:$0xf]
  %v78 = vld [vmem:[%s1 + $0x40] sm:$0xf]
  %v79 = vld [vmem:[%s1 + $0x44] sm:$0xf]
  %v80 = vld [vmem:[%s1 + $0x48] sm:$0xf]
  %v81 = vld [vmem:[%s1 + $0x4c] sm:$0xf]
  %v82 = vld [vmem:[%s1 + $0x50] sm:$0xf]
  %v83 = vld [vmem:[%s1 + $0x54] sm:$0xf]
  %v84 = vld [vmem:[%s1 + $0x58] sm:$0xf]
  %v85 = vld [vmem:[%s1 + $0x5c] sm:$0xf]
  %v86 = vpack.c.bf16 %v60, %v60
  %v87 = vpack.c.bf16 %v61, %v61
  %v112 = vunpack.c.l.b16 %v62
  %v113 = vunpack.c.l.b16 %v63
  %v114 = vunpack.c.l.b16 %v64
  %v115 = vunpack.c.l.b16 %v65
  %v116 = vunpack.c.l.b16 %v66
  %v117 = vunpack.c.l.b16 %v67
  %v118 = vunpack.c.l.b16 %v68
  %v119 = vunpack.c.l.b16 %v69
  %v120 = vunpack.c.l.b16 %v70
  %v121 = vunpack.c.l.b16 %v71
  %v122 = vunpack.c.l.b16 %v72
  %v123 = vunpack.c.l.b16 %v73
  %v124 = vunpack.c.l.b16 %v74
  %v125 = vunpack.c.l.b16 %v75
  %v126 = vunpack.c.l.b16 %v76
  %v127 = vunpack.c.l.b16 %v77
  %v128 = vunpack.c.l.b16 %v78
  %v129 = vunpack.c.l.b16 %v79
  %v130 = vunpack.c.l.b16 %v80
  %v131 = vunpack.c.l.b16 %v81
  %v132 = vunpack.c.l.b16 %v82
  %v133 = vunpack.c.l.b16 %v83
  %v134 = vunpack.c.l.b16 %v84
  %v135 = vunpack.c.l.b16 %v85
  %v136 = vpack.c.b16 %v113, %v112
  %v137 = vpack.c.b16 %v115, %v114
  %v138 = vpack.c.b16 %v117, %v116
  %v139 = vpack.c.b16 %v119, %v118
  %v140 = vpack.c.b16 %v121, %v120
  %v141 = vpack.c.b16 %v123, %v122
  %v142 = vpack.c.b16 %v125, %v124
  %v143 = vpack.c.b16 %v127, %v126
  %v144 = vpack.c.b16 %v129, %v128
  %v145 = vpack.c.b16 %v131, %v130
  %v146 = vpack.c.b16 %v133, %v132
  %v147 = vpack.c.b16 %v135, %v134
  %vm160 = vcmask 523264
  %v162 = vsel %vm160, %v87, 0
  %164 = vmatprep.subr.bf16.mxu0 0
  %165 = vmatpush1.bf16.msra.mxu0 %v136
  %166 = vmatprep.subr.bf16.mxu0 0
  %167 = vmatpush1.bf16.msra.mxu0 %v137
  %168 = vmatprep.subr.bf16.mxu0 0
  %169 = vmatpush1.bf16.msra.mxu0 %v138
  %170 = vmatprep.subr.bf16.mxu0 0
  %171 = vmatpush1.bf16.msra.mxu0 %v139
  %172 = vmatprep.subr.bf16.mxu0 0
  %173 = vmatpush1.bf16.msra.mxu0 %v140
  %174 = vmatprep.subr.bf16.mxu0 0
  %175 = vmatpush1.bf16.msra.mxu0 %v141
  %176 = vmatprep.subr.bf16.mxu0 0
  %177 = vmatpush1.bf16.msra.mxu0 %v142
  %178 = vmatprep.subr.bf16.mxu0 0
  %179 = vmatpush1.bf16.msra.mxu0 %v143
  %180 = vmatprep.subr.bf16.mxu0 0
  %181 = vmatpush1.bf16.msra.mxu0 %v144
  %182 = vmatprep.subr.bf16.mxu0 0
  %183 = vmatpush1.bf16.msra.mxu0 %v145
  %184 = vmatprep.subr.bf16.mxu0 0
  %185 = vmatpush1.bf16.msra.mxu0 %v146
  %186 = vmatprep.subr.bf16.mxu0 0
  %187 = vmatpush1.bf16.msra.mxu0 %v147
  %188 = vmatprep.subr.bf16.mxu0 0
  %189 = vmatpush1.bf16.msra.mxu0 0
  %190 = vmatprep.subr.bf16.mxu0 0
  %191 = vmatpush1.bf16.msra.mxu0 0
  %192 = vmatprep.subr.bf16.mxu0 0
  %193 = vmatpush1.bf16.msra.mxu0 0
  %194 = vmatprep.subr.bf16.mxu0 0
  %195 = vmatpush1.bf16.msra.mxu0 0
  %196 = vmatprep.mubr.bf16.mxu0 %v162
  %197 = vmatmul.mubr.bf16.gmra.mrb[0].mxu0 %v86
  %v198 = vpop.f32.mrb[0].mxu0
  %v199 = vadd.f32 0.0, %v198
  %v200 = vpop.f32.mrb[0].mxu0
  %v201 = vpop.f32.mrb[0].mxu0
  %v202 = vpop.f32.mrb[0].mxu0
  %203 = vdwg.mxu0
  %v204 = vld [vmem:[%s3] sm:$0x1f]
  %v205 = vld [vmem:[%s2] sm:$0x1]
  %v206 = vadd.f32 %v205, %v204
  %v208 = vrot.slane %v204, 1
  %v210 = vadd.f32 %v199, %v208
  %v211 = vrot.slane %v204, 5
  %v213 = vadd.f32 %v199, %v211
  %v215 = vrot.slane %v210, 7
  %v218 = vlaneseq
  %v219 = vshrl.u32 %v218, 7
  %v220 = vsub.s32 0, %v219
  %v221 = vrot.slane %v206, %v220
  %v224 = vrot.slane %v213, 6
  %vm226 = vcmask 1040384
  %v227 = vsel %vm226, %v206, %v215
  %vm228 = vcmask 1044480
  %v229 = vsel %vm228, %v227, %v221
  %vm230 = vcmask 1045504
  %v231 = vsel %vm230, %v229, %v224
  %v232 = vld [vmem:[%s4] sm:$0x1]
  %v233 = vld [vmem:[%s5] sm:$0x1]
  %vm234 = vcmask 261120
  %v235 = vsel %vm234, %v231, 0.0
  %236 = vadd.xlane.f32.xlu0 %v235
  %v237 = vpop.xlane.xlu0 %236
  %vm238 = vcmask 254976
  %v239 = vsel %vm238, %v224, 0.0
  %240 = vadd.xlane.f32.xlu0 %v239
  %v241 = vpop.xlane.xlu0 %240
  %v242 = vrcp.pop 32.0
  %v243 = vmul.f32 %v237, %v242
  %v244 = vmul.f32 %v241, %v242
  %v245 = vsub.f32 %v231, %v243
  %v246 = vsub.f32 %v224, %v244
  %v247 = vmul.f32 %v245, %v245
  %v248 = vmul.f32 %v246, %v246
  %v249 = vsel %vm234, %v247, 0.0
  %250 = vadd.xlane.f32.xlu0 %v249
  %v251 = vpop.xlane.xlu0 %250
  %v252 = vsel %vm238, %v248, 0.0
  %253 = vadd.xlane.f32.xlu0 %v252
  %v254 = vpop.xlane.xlu0 %253
  %v255 = vmul.f32 %v251, %v242
  %v256 = vmul.f32 %v254, %v242
  %v257 = vadd.f32 %v255, 1e-05
  %v258 = vadd.f32 %v256, 1e-05
  %v259 = vrsqrt.pop %v257
  %v260 = vrsqrt.pop %v258
  %v261 = vmul.f32 %v245, %v259
  %v262 = vmul.f32 %v246, %v260
  %v264 = vlaneseq
  %v265 = vshrl.u32 %v264, 7
  %v266 = vsub.s32 0, %v265
  %v267 = vrot.slane %v232, %v266
  %v269 = vmul.f32 %v261, %v267
  %v270 = vmul.f32 %v262, %v267
  %v272 = vlaneseq
  %v273 = vshrl.u32 %v272, 7
  %v274 = vsub.s32 0, %v273
  %v275 = vrot.slane %v233, %v274
  %v277 = vadd.f32 %v269, %v275
  %v278 = vadd.f32 %v270, %v275
  %v279 = vld [vmem:[%s6] sm:$0x1]
  %v280 = vld [vmem:[%s7] sm:$0x1]
  %v281 = vsel %vm234, %v277, 0.0
  %282 = vadd.xlane.f32.xlu0 %v281
  %v283 = vpop.xlane.xlu0 %282
  %v284 = vsel %vm238, %v278, 0.0
  %285 = vadd.xlane.f32.xlu0 %v284
  %v286 = vpop.xlane.xlu0 %285
  %v287 = vmul.f32 %v283, %v242
  %v288 = vmul.f32 %v286, %v242
  %v289 = vsub.f32 %v277, %v287
  %v290 = vsub.f32 %v278, %v288
  %v291 = vmul.f32 %v289, %v289
  %v292 = vmul.f32 %v290, %v290
  %v293 = vsel %vm234, %v291, 0.0
  %294 = vadd.xlane.f32.xlu0 %v293
  %v295 = vpop.xlane.xlu0 %294
  %v296 = vsel %vm238, %v292, 0.0
  %297 = vadd.xlane.f32.xlu0 %v296
  %v298 = vpop.xlane.xlu0 %297
  %v299 = vmul.f32 %v295, %v242
  %v300 = vmul.f32 %v298, %v242
  %v301 = vadd.f32 %v299, 1e-05
  %v302 = vadd.f32 %v300, 1e-05
  %v303 = vrsqrt.pop %v301
  %v304 = vrsqrt.pop %v302
  %v305 = vmul.f32 %v289, %v303
  %v306 = vmul.f32 %v290, %v304
  %v308 = vlaneseq
  %v309 = vshrl.u32 %v308, 7
  %v310 = vsub.s32 0, %v309
  %v311 = vrot.slane %v279, %v310
  %v313 = vmul.f32 %v305, %v311
  %v314 = vmul.f32 %v306, %v311
  %v316 = vlaneseq
  %v317 = vshrl.u32 %v316, 7
  %v318 = vsub.s32 0, %v317
  %v319 = vrot.slane %v280, %v318
  %v321 = vadd.f32 %v313, %v319
  %v322 = vadd.f32 %v314, %v319
  %v323 = vld [vmem:[%s8] sm:$0xf]
  %v324 = vld [vmem:[%s8 + $0x4] sm:$0xf]
  %v325 = vld [vmem:[%s8 + $0x8] sm:$0xf]
  %v326 = vld [vmem:[%s8 + $0xc] sm:$0xf]
  %v327 = vpack.c.bf16 %v322, %v321
  %v328 = vld [vmem:[%s9] sm:$0x1]
  %v330 = vlaneseq
  %v331 = vshrl.u32 %v330, 7
  %v332 = vsub.s32 0, %v331
  %v333 = vrot.slane %v328, %v332
  %v339 = vunpack.c.l.b16 %v323
  %v340 = vunpack.c.l.b16 %v324
  %v341 = vunpack.c.l.b16 %v325
  %v342 = vunpack.c.l.b16 %v326
  %v343 = vpack.c.b16 %v340, %v339
  %v344 = vpack.c.b16 %v342, %v341
  %v348 = vsel %vm234, %v327, 0
  %350 = vmatprep.subr.bf16.mxu0 0
  %351 = vmatpush1.bf16.msra.mxu0 %v343
  %352 = vmatprep.subr.bf16.mxu0 0
  %353 = vmatpush1.bf16.msra.mxu0 %v344
  %354 = vmatprep.subr.bf16.mxu0 0
  %355 = vmatpush1.bf16.msra.mxu0 0
  %356 = vmatprep.subr.bf16.mxu0 0
  %357 = vmatpush1.bf16.msra.mxu0 0
  %358 = vmatprep.subr.bf16.mxu0 0
  %359 = vmatpush1.bf16.msra.mxu0 0
  %360 = vmatprep.subr.bf16.mxu0 0
  %361 = vmatpush1.bf16.msra.mxu0 0
  %362 = vmatprep.subr.bf16.mxu0 0
  %363 = vmatpush1.bf16.msra.mxu0 0
  %364 = vmatprep.subr.bf16.mxu0 0
  %365 = vmatpush1.bf16.msra.mxu0 0
  %366 = vmatprep.subr.bf16.mxu0 0
  %367 = vmatpush1.bf16.msra.mxu0 0
  %368 = vmatprep.subr.bf16.mxu0 0
  %369 = vmatpush1.bf16.msra.mxu0 0
  %370 = vmatprep.subr.bf16.mxu0 0
  %371 = vmatpush1.bf16.msra.mxu0 0
  %372 = vmatprep.subr.bf16.mxu0 0
  %373 = vmatpush1.bf16.msra.mxu0 0
  %374 = vmatprep.subr.bf16.mxu0 0
  %375 = vmatpush1.bf16.msra.mxu0 0
  %376 = vmatprep.subr.bf16.mxu0 0
  %377 = vmatpush1.bf16.msra.mxu0 0
  %378 = vmatprep.subr.bf16.mxu0 0
  %379 = vmatpush1.bf16.msra.mxu0 0
  %380 = vmatprep.subr.bf16.mxu0 0
  %381 = vmatpush1.bf16.msra.mxu0 0
  %382 = vmatprep.mubr.bf16.mxu0 0
  %383 = vmatmul.mubr.bf16.gmra.mrb[0].mxu0 %v348
  %v384 = vpop.f32.mrb[0].mxu0
  %v385 = vadd.f32 %v333, %v384
  %v386 = vpop.f32.mrb[0].mxu0
  %v387 = vpop.f32.mrb[0].mxu0
  %v388 = vadd.f32 %v333, %v387
  %v389 = vpop.f32.mrb[0].mxu0
  %390 = vdwg.mxu0
  %v391 = vpack.c.bf16 %v385, %v385
  %393 = vrot.lane.b32.xlu0 %v391, 96
  %v394 = vpop.permute.xlu0 %393
  %vm395 = vcmask 64512
  %v397 = vsel %vm395, %v391, 0
  %v400 = vsel %vm395, %v394, 0
  %402 = vmatprep.subr.bf16.mxu0 0
  %403 = vmatpush1.bf16.xpose.msra.mxu0 %v400
  %404 = vmatprep.subr.bf16.mxu0 0
  %405 = vmatpush1.bf16.xpose.msra.mxu0 0
  %406 = vmatprep.subr.bf16.mxu0 0
  %407 = vmatpush1.bf16.xpose.msra.mxu0 0
  %408 = vmatprep.subr.bf16.mxu0 0
  %409 = vmatpush1.bf16.xpose.msra.mxu0 0
  %410 = vmatprep.subr.bf16.mxu0 0
  %411 = vmatpush1.bf16.xpose.msra.mxu0 0
  %412 = vmatprep.subr.bf16.mxu0 0
  %413 = vmatpush1.bf16.xpose.msra.mxu0 0
  %414 = vmatprep.subr.bf16.mxu0 0
  %415 = vmatpush1.bf16.xpose.msra.mxu0 0
  %416 = vmatprep.subr.bf16.mxu0 0
  %417 = vmatpush1.bf16.xpose.msra.mxu0 0
  %418 = vmatprep.subr.bf16.mxu0 0
  %419 = vmatpush1.bf16.xpose.msra.mxu0 0
  %420 = vmatprep.subr.bf16.mxu0 0
  %421 = vmatpush1.bf16.xpose.msra.mxu0 0
  %422 = vmatprep.subr.bf16.mxu0 0
  %423 = vmatpush1.bf16.xpose.msra.mxu0 0
  %424 = vmatprep.subr.bf16.mxu0 0
  %425 = vmatpush1.bf16.xpose.msra.mxu0 0
  %426 = vmatprep.subr.bf16.mxu0 0
  %427 = vmatpush1.bf16.xpose.msra.mxu0 0
  %428 = vmatprep.subr.bf16.mxu0 0
  %429 = vmatpush1.bf16.xpose.msra.mxu0 0
  %430 = vmatprep.subr.bf16.mxu0 0
  %431 = vmatpush1.bf16.xpose.msra.mxu0 0
  %432 = vmatprep.subr.bf16.mxu0 0
  %433 = vmatpush1.bf16.xpose.msra.mxu0 0
  %434 = vmatprep.mubr.bf16.mxu0 0
  %435 = vmatmul.mubr.bf16.gmra.mrb[0].mxu0 %v397
  %v436 = vpop.f32.mrb[0].mxu0
  %v437 = vadd.f32 0.0, %v436
  %v438 = vpop.f32.mrb[0].mxu0
  %v439 = vpop.f32.mrb[0].mxu0
  %v440 = vpop.f32.mrb[0].mxu0
  %441 = vdwg.mxu0
  %v442 = vmul.f32 %v437, 0.35355338
  %vm443 = vcmask 36864
  %v444 = vsel %vm443, %v442, -inf
  %445 = vmax.xlane.f32.xlu0 %v444
  %v446 = vpop.xlane.xlu0 %445
  %v447 = vsub.f32 %v442, %v446
  %v448 = vmul.f32 %v447, 1.442695
  %v449 = vpow.pop %v448
  %v450 = vsel %vm443, %v449, 0.0
  %451 = vadd.xlane.f32.xlu0 %v450
  %v452 = vpop.xlane.xlu0 %451
  %v453 = vrcp.pop %v452
  %v454 = vmul.f32 %v449, %v453
  %v455 = vpack.c.bf16 %v454, %v454
  %456 = vrot.lane.b32.xlu0 %v391, 64
  %v457 = vpop.permute.xlu0 %456
  %vm458 = vcmask 39936
  %v460 = vsel %vm458, %v455, 0
  %vm462 = vcmask 1041408
  %vm463 = vcmask 1042432
  %v464 = vsel %vm462, 4294967295, 65535
  %v465 = vsel %vm463, %v464, 0
  %v467 = vand.u32 %v457, %v465
  %469 = vmatprep.subr.bf16.mxu0 0
  %470 = vmatpush1.bf16.msra.mxu0 %v467
  %471 = vmatprep.subr.bf16.mxu0 0
  %472 = vmatpush1.bf16.msra.mxu0 0
  %473 = vmatprep.subr.bf16.mxu0 0
  %474 = vmatpush1.bf16.msra.mxu0 0
  %475 = vmatprep.subr.bf16.mxu0 0
  %476 = vmatpush1.bf16.msra.mxu0 0
  %477 = vmatprep.subr.bf16.mxu0 0
  %478 = vmatpush1.bf16.msra.mxu0 0
  %479 = vmatprep.subr.bf16.mxu0 0
  %480 = vmatpush1.bf16.msra.mxu0 0
  %481 = vmatprep.subr.bf16.mxu0 0
  %482 = vmatpush1.bf16.msra.mxu0 0
  %483 = vmatprep.subr.bf16.mxu0 0
  %484 = vmatpush1.bf16.msra.mxu0 0
  %485 = vmatprep.subr.bf16.mxu0 0
  %486 = vmatpush1.bf16.msra.mxu0 0
  %487 = vmatprep.subr.bf16.mxu0 0
  %488 = vmatpush1.bf16.msra.mxu0 0
  %489 = vmatprep.subr.bf16.mxu0 0
  %490 = vmatpush1.bf16.msra.mxu0 0
  %491 = vmatprep.subr.bf16.mxu0 0
  %492 = vmatpush1.bf16.msra.mxu0 0
  %493 = vmatprep.subr.bf16.mxu0 0
  %494 = vmatpush1.bf16.msra.mxu0 0
  %495 = vmatprep.subr.bf16.mxu0 0
  %496 = vmatpush1.bf16.msra.mxu0 0
  %497 = vmatprep.subr.bf16.mxu0 0
  %498 = vmatpush1.bf16.msra.mxu0 0
  %499 = vmatprep.subr.bf16.mxu0 0
  %500 = vmatpush1.bf16.msra.mxu0 0
  %501 = vmatprep.mubr.bf16.mxu0 0
  %502 = vmatmul.mubr.bf16.gmra.mrb[0].mxu0 %v460
  %v503 = vpop.f32.mrb[0].mxu0
  %v504 = vadd.f32 0.0, %v503
  %v505 = vpop.f32.mrb[0].mxu0
  %v506 = vpop.f32.mrb[0].mxu0
  %v507 = vpop.f32.mrb[0].mxu0
  %508 = vdwg.mxu0
  %509 = vrot.lane.b32.xlu0 %v391, 120
  %v510 = vpop.permute.xlu0 %509
  %511 = vrot.lane.b32.xlu0 %v391, 88
  %v512 = vpop.permute.xlu0 %511
  %v514 = vsel %vm395, %v510, 0
  %v517 = vsel %vm395, %v512, 0
  %519 = vmatprep.subr.bf16.mxu0 0
  %520 = vmatpush1.bf16.xpose.msra.mxu0 %v517
  %521 = vmatprep.subr.bf16.mxu0 0
  %522 = vmatpush1.bf16.xpose.msra.mxu0 0
  %523 = vmatprep.subr.bf16.mxu0 0
  %524 = vmatpush1.bf16.xpose.msra.mxu0 0
  %525 = vmatprep.subr.bf16.mxu0 0
  %526 = vmatpush1.bf16.xpose.msra.mxu0 0
  %527 = vmatprep.subr.bf16.mxu0 0
  %528 = vmatpush1.bf16.xpose.msra.mxu0 0
  %529 = vmatprep.subr.bf16.mxu0 0
  %530 = vmatpush1.bf16.xpose.msra.mxu0 0
  %531 = vmatprep.subr.bf16.mxu0 0
  %532 = vmatpush1.bf16.xpose.msra.mxu0 0
  %533 = vmatprep.subr.bf16.mxu0 0
  %534 = vmatpush1.bf16.xpose.msra.mxu0 0
  %535 = vmatprep.subr.bf16.mxu0 0
  %536 = vmatpush1.bf16.xpose.msra.mxu0 0
  %537 = vmatprep.subr.bf16.mxu0 0
  %538 = vmatpush1.bf16.xpose.msra.mxu0 0
  %539 = vmatprep.subr.bf16.mxu0 0
  %540 = vmatpush1.bf16.xpose.msra.mxu0 0
  %541 = vmatprep.subr.bf16.mxu0 0
  %542 = vmatpush1.bf16.xpose.msra.mxu0 0
  %543 = vmatprep.subr.bf16.mxu0 0
  %544 = vmatpush1.bf16.xpose.msra.mxu0 0
  %545 = vmatprep.subr.bf16.mxu0 0
  %546 = vmatpush1.bf16.xpose.msra.mxu0 0
  %547 = vmatprep.subr.bf16.mxu0 0
  %548 = vmatpush1.bf16.xpose.msra.mxu0 0
  %549 = vmatprep.subr.bf16.mxu0 0
  %550 = vmatpush1.bf16.xpose.msra.mxu0 0
  %551 = vmatprep.mubr.bf16.mxu0 0
  %552 = vmatmul.mubr.bf16.gmra.mrb[0].mxu0 %v514
  %v553 = vpop.f32.mrb[0].mxu0
  %v554 = vadd.f32 0.0, %v553
  %v555 = vpop.f32.mrb[0].mxu0
  %v556 = vpop.f32.mrb[0].mxu0
  %v557 = vpop.f32.mrb[0].mxu0
  %558 = vdwg.mxu0
  %v559 = vmul.f32 %v554, 0.35355338
  %v560 = vsel %vm443, %v559, -inf
  %561 = vmax.xlane.f32.xlu0 %v560
  %v562 = vpop.xlane.xlu0 %561
  %v563 = vsub.f32 %v559, %v562
  %v564 = vmul.f32 %v563, 1.442695
  %v565 = vpow.pop %v564
  %v566 = vsel %vm443, %v565, 0.0
  %567 = vadd.xlane.f32.xlu0 %v566
  %v568 = vpop.xlane.xlu0 %567
  %v569 = vrcp.pop %v568
  %v570 = vmul.f32 %v565, %v569
  %v571 = vpack.c.bf16 %v570, %v570
  %572 = vrot.lane.b32.xlu0 %v391, 56
  %v573 = vpop.permute.xlu0 %572
  %v575 = vsel %vm458, %v571, 0
  %v578 = vand.u32 %v573, %v465
  %580 = vmatprep.subr.bf16.mxu0 0
  %581 = vmatpush1.bf16.msra.mxu0 %v578
  %582 = vmatprep.subr.bf16.mxu0 0
  %583 = vmatpush1.bf16.msra.mxu0 0
  %584 = vmatprep.subr.bf16.mxu0 0
  %585 = vmatpush1.bf16.msra.mxu0 0
  %586 = vmatprep.subr.bf16.mxu0 0
  %587 = vmatpush1.bf16.msra.mxu0 0
  %588 = vmatprep.subr.bf16.mxu0 0
  %589 = vmatpush1.bf16.msra.mxu0 0
  %590 = vmatprep.subr.bf16.mxu0 0
  %591 = vmatpush1.bf16.msra.mxu0 0
  %592 = vmatprep.subr.bf16.mxu0 0
  %593 = vmatpush1.bf16.msra.mxu0 0
  %594 = vmatprep.subr.bf16.mxu0 0
  %595 = vmatpush1.bf16.msra.mxu0 0
  %596 = vmatprep.subr.bf16.mxu0 0
  %597 = vmatpush1.bf16.msra.mxu0 0
  %598 = vmatprep.subr.bf16.mxu0 0
  %599 = vmatpush1.bf16.msra.mxu0 0
  %600 = vmatprep.subr.bf16.mxu0 0
  %601 = vmatpush1.bf16.msra.mxu0 0
  %602 = vmatprep.subr.bf16.mxu0 0
  %603 = vmatpush1.bf16.msra.mxu0 0
  %604 = vmatprep.subr.bf16.mxu0 0
  %605 = vmatpush1.bf16.msra.mxu0 0
  %606 = vmatprep.subr.bf16.mxu0 0
  %607 = vmatpush1.bf16.msra.mxu0 0
  %608 = vmatprep.subr.bf16.mxu0 0
  %609 = vmatpush1.bf16.msra.mxu0 0
  %610 = vmatprep.subr.bf16.mxu0 0
  %611 = vmatpush1.bf16.msra.mxu0 0
  %612 = vmatprep.mubr.bf16.mxu0 0
  %613 = vmatmul.mubr.bf16.gmra.mrb[0].mxu0 %v575
  %v614 = vpop.f32.mrb[0].mxu0
  %v615 = vadd.f32 0.0, %v614
  %v616 = vpop.f32.mrb[0].mxu0
  %v617 = vpop.f32.mrb[0].mxu0
  %v618 = vpop.f32.mrb[0].mxu0
  %619 = vdwg.mxu0
  %620 = vrot.lane.b32.xlu0 %v391, 112
  %v621 = vpop.permute.xlu0 %620
  %622 = vrot.lane.b32.xlu0 %v391, 80
  %v623 = vpop.permute.xlu0 %622
  %v625 = vsel %vm395, %v621, 0
  %v628 = vsel %vm395, %v623, 0
  %630 = vmatprep.subr.bf16.mxu0 0
  %631 = vmatpush1.bf16.xpose.msra.mxu0 %v628
  %632 = vmatprep.subr.bf16.mxu0 0
  %633 = vmatpush1.bf16.xpose.msra.mxu0 0
  %634 = vmatprep.subr.bf16.mxu0 0
  %635 = vmatpush1.bf16.xpose.msra.mxu0 0
  %636 = vmatprep.subr.bf16.mxu0 0
  %637 = vmatpush1.bf16.xpose.msra.mxu0 0
  %638 = vmatprep.subr.bf16.mxu0 0
  %639 = vmatpush1.bf16.xpose.msra.mxu0 0
  %640 = vmatprep.subr.bf16.mxu0 0
  %641 = vmatpush1.bf16.xpose.msra.mxu0 0
  %642 = vmatprep.subr.bf16.mxu0 0
  %643 = vmatpush1.bf16.xpose.msra.mxu0 0
  %644 = vmatprep.subr.bf16.mxu0 0
  %645 = vmatpush1.bf16.xpose.msra.mxu0 0
  %646 = vmatprep.subr.bf16.mxu0 0
  %647 = vmatpush1.bf16.xpose.msra.mxu0 0
  %648 = vmatprep.subr.bf16.mxu0 0
  %649 = vmatpush1.bf16.xpose.msra.mxu0 0
  %650 = vmatprep.subr.bf16.mxu0 0
  %651 = vmatpush1.bf16.xpose.msra.mxu0 0
  %652 = vmatprep.subr.bf16.mxu0 0
  %653 = vmatpush1.bf16.xpose.msra.mxu0 0
  %654 = vmatprep.subr.bf16.mxu0 0
  %655 = vmatpush1.bf16.xpose.msra.mxu0 0
  %656 = vmatprep.subr.bf16.mxu0 0
  %657 = vmatpush1.bf16.xpose.msra.mxu0 0
  %658 = vmatprep.subr.bf16.mxu0 0
  %659 = vmatpush1.bf16.xpose.msra.mxu0 0
  %660 = vmatprep.subr.bf16.mxu0 0
  %661 = vmatpush1.bf16.xpose.msra.mxu0 0
  %662 = vmatprep.mubr.bf16.mxu0 0
  %663 = vmatmul.mubr.bf16.gmra.mrb[0].mxu0 %v625
  %v664 = vpop.f32.mrb[0].mxu0
  %v665 = vadd.f32 0.0, %v664
  %v666 = vpop.f32.mrb[0].mxu0
  %v667 = vpop.f32.mrb[0].mxu0
  %v668 = vpop.f32.mrb[0].mxu0
  %669 = vdwg.mxu0
  %v670 = vmul.f32 %v665, 0.35355338
  %v671 = vsel %vm443, %v670, -inf
  %672 = vmax.xlane.f32.xlu0 %v671
  %v673 = vpop.xlane.xlu0 %672
  %v674 = vsub.f32 %v670, %v673
  %v675 = vmul.f32 %v674, 1.442695
  %v676 = vpow.pop %v675
  %v677 = vsel %vm443, %v676, 0.0
  %678 = vadd.xlane.f32.xlu0 %v677
  %v679 = vpop.xlane.xlu0 %678
  %v680 = vrcp.pop %v679
  %v681 = vmul.f32 %v676, %v680
  %v682 = vpack.c.bf16 %v681, %v681
  %683 = vrot.lane.b32.xlu0 %v391, 48
  %v684 = vpop.permute.xlu0 %683
  %v686 = vsel %vm458, %v682, 0
  %v689 = vand.u32 %v684, %v465
  %691 = vmatprep.subr.bf16.mxu0 0
  %692 = vmatpush1.bf16.msra.mxu0 %v689
  %693 = vmatprep.subr.bf16.mxu0 0
  %694 = vmatpush1.bf16.msra.mxu0 0
  %695 = vmatprep.subr.bf16.mxu0 0
  %696 = vmatpush1.bf16.msra.mxu0 0
  %697 = vmatprep.subr.bf16.mxu0 0
  %698 = vmatpush1.bf16.msra.mxu0 0
  %699 = vmatprep.subr.bf16.mxu0 0
  %700 = vmatpush1.bf16.msra.mxu0 0
  %701 = vmatprep.subr.bf16.mxu0 0
  %702 = vmatpush1.bf16.msra.mxu0 0
  %703 = vmatprep.subr.bf16.mxu0 0
  %704 = vmatpush1.bf16.msra.mxu0 0
  %705 = vmatprep.subr.bf16.mxu0 0
  %706 = vmatpush1.bf16.msra.mxu0 0
  %707 = vmatprep.subr.bf16.mxu0 0
  %708 = vmatpush1.bf16.msra.mxu0 0
  %709 = vmatprep.subr.bf16.mxu0 0
  %710 = vmatpush1.bf16.msra.mxu0 0
  %711 = vmatprep.subr.bf16.mxu0 0
  %712 = vmatpush1.bf16.msra.mxu0 0
  %713 = vmatprep.subr.bf16.mxu0 0
  %714 = vmatpush1.bf16.msra.mxu0 0
  %715 = vmatprep.subr.bf16.mxu0 0
  %716 = vmatpush1.bf16.msra.mxu0 0
  %717 = vmatprep.subr.bf16.mxu0 0
  %718 = vmatpush1.bf16.msra.mxu0 0
  %719 = vmatprep.subr.bf16.mxu0 0
  %720 = vmatpush1.bf16.msra.mxu0 0
  %721 = vmatprep.subr.bf16.mxu0 0
  %722 = vmatpush1.bf16.msra.mxu0 0
  %723 = vmatprep.mubr.bf16.mxu0 0
  %724 = vmatmul.mubr.bf16.gmra.mrb[0].mxu0 %v686
  %v725 = vpop.f32.mrb[0].mxu0
  %v726 = vadd.f32 0.0, %v725
  %v727 = vpop.f32.mrb[0].mxu0
  %v728 = vpop.f32.mrb[0].mxu0
  %v729 = vpop.f32.mrb[0].mxu0
  %730 = vdwg.mxu0
  %731 = vrot.lane.b32.xlu0 %v391, 104
  %v732 = vpop.permute.xlu0 %731
  %733 = vrot.lane.b32.xlu0 %v391, 72
  %v734 = vpop.permute.xlu0 %733
  %v736 = vsel %vm395, %v732, 0
  %v739 = vsel %vm395, %v734, 0
  %741 = vmatprep.subr.bf16.mxu0 0
  %742 = vmatpush1.bf16.xpose.msra.mxu0 %v739
  %743 = vmatprep.subr.bf16.mxu0 0
  %744 = vmatpush1.bf16.xpose.msra.mxu0 0
  %745 = vmatprep.subr.bf16.mxu0 0
  %746 = vmatpush1.bf16.xpose.msra.mxu0 0
  %747 = vmatprep.subr.bf16.mxu0 0
  %748 = vmatpush1.bf16.xpose.msra.mxu0 0
  %749 = vmatprep.subr.bf16.mxu0 0
  %750 = vmatpush1.bf16.xpose.msra.mxu0 0
  %751 = vmatprep.subr.bf16.mxu0 0
  %752 = vmatpush1.bf16.xpose.msra.mxu0 0
  %753 = vmatprep.subr.bf16.mxu0 0
  %754 = vmatpush1.bf16.xpose.msra.mxu0 0
  %755 = vmatprep.subr.bf16.mxu0 0
  %756 = vmatpush1.bf16.xpose.msra.mxu0 0
  %757 = vmatprep.subr.bf16.mxu0 0
  %758 = vmatpush1.bf16.xpose.msra.mxu0 0
  %759 = vmatprep.subr.bf16.mxu0 0
  %760 = vmatpush1.bf16.xpose.msra.mxu0 0
  %761 = vmatprep.subr.bf16.mxu0 0
  %762 = vmatpush1.bf16.xpose.msra.mxu0 0
  %763 = vmatprep.subr.bf16.mxu0 0
  %764 = vmatpush1.bf16.xpose.msra.mxu0 0
  %765 = vmatprep.subr.bf16.mxu0 0
  %766 = vmatpush1.bf16.xpose.msra.mxu0 0
  %767 = vmatprep.subr.bf16.mxu0 0
  %768 = vmatpush1.bf16.xpose.msra.mxu0 0
  %769 = vmatprep.subr.bf16.mxu0 0
  %770 = vmatpush1.bf16.xpose.msra.mxu0 0
  %771 = vmatprep.subr.bf16.mxu0 0
  %772 = vmatpush1.bf16.xpose.msra.mxu0 0
  %773 = vmatprep.mubr.bf16.mxu0 0
  %774 = vmatmul.mubr.bf16.gmra.mrb[0].mxu0 %v736
  %v775 = vpop.f32.mrb[0].mxu0
  %v776 = vadd.f32 0.0, %v775
  %v777 = vpop.f32.mrb[0].mxu0
  %v778 = vpop.f32.mrb[0].mxu0
  %v779 = vpop.f32.mrb[0].mxu0
  %780 = vdwg.mxu0
  %v781 = vmul.f32 %v776, 0.35355338
  %v782 = vsel %vm443, %v781, -inf
  %783 = vmax.xlane.f32.xlu0 %v782
  %v784 = vpop.xlane.xlu0 %783
  %v785 = vsub.f32 %v781, %v784
  %v786 = vmul.f32 %v785, 1.442695
  %v787 = vpow.pop %v786
  %v788 = vsel %vm443, %v787, 0.0
  %789 = vadd.xlane.f32.xlu0 %v788
  %v790 = vpop.xlane.xlu0 %789
  %v791 = vrcp.pop %v790
  %v792 = vmul.f32 %v787, %v791
  %v793 = vpack.c.bf16 %v792, %v792
  %794 = vrot.lane.b32.xlu0 %v391, 40
  %v795 = vpop.permute.xlu0 %794
  %v797 = vsel %vm458, %v793, 0
  %v800 = vand.u32 %v795, %v465
  %802 = vmatprep.subr.bf16.mxu0 0
  %803 = vmatpush1.bf16.msra.mxu0 %v800
  %804 = vmatprep.subr.bf16.mxu0 0
  %805 = vmatpush1.bf16.msra.mxu0 0
  %806 = vmatprep.subr.bf16.mxu0 0
  %807 = vmatpush1.bf16.msra.mxu0 0
  %808 = vmatprep.subr.bf16.mxu0 0
  %809 = vmatpush1.bf16.msra.mxu0 0
  %810 = vmatprep.subr.bf16.mxu0 0
  %811 = vmatpush1.bf16.msra.mxu0 0
  %812 = vmatprep.subr.bf16.mxu0 0
  %813 = vmatpush1.bf16.msra.mxu0 0
  %814 = vmatprep.subr.bf16.mxu0 0
  %815 = vmatpush1.bf16.msra.mxu0 0
  %816 = vmatprep.subr.bf16.mxu0 0
  %817 = vmatpush1.bf16.msra.mxu0 0
  %818 = vmatprep.subr.bf16.mxu0 0
  %819 = vmatpush1.bf16.msra.mxu0 0
  %820 = vmatprep.subr.bf16.mxu0 0
  %821 = vmatpush1.bf16.msra.mxu0 0
  %822 = vmatprep.subr.bf16.mxu0 0
  %823 = vmatpush1.bf16.msra.mxu0 0
  %824 = vmatprep.subr.bf16.mxu0 0
  %825 = vmatpush1.bf16.msra.mxu0 0
  %826 = vmatprep.subr.bf16.mxu0 0
  %827 = vmatpush1.bf16.msra.mxu0 0
  %828 = vmatprep.subr.bf16.mxu0 0
  %829 = vmatpush1.bf16.msra.mxu0 0
  %830 = vmatprep.subr.bf16.mxu0 0
  %831 = vmatpush1.bf16.msra.mxu0 0
  %832 = vmatprep.subr.bf16.mxu0 0
  %833 = vmatpush1.bf16.msra.mxu0 0
  %834 = vmatprep.mubr.bf16.mxu0 0
  %835 = vmatmul.mubr.bf16.gmra.mrb[0].mxu0 %v797
  %v836 = vpop.f32.mrb[0].mxu0
  %v837 = vadd.f32 0.0, %v836
  %v838 = vpop.f32.mrb[0].mxu0
  %v839 = vpop.f32.mrb[0].mxu0
  %v840 = vpop.f32.mrb[0].mxu0
  %841 = vdwg.mxu0
  %843 = vrot.lane.b32.xlu0 %v615, 8
  %v844 = vpop.permute.xlu0 %843
  %847 = vrot.lane.b32.xlu0 %v726, 16
  %v848 = vpop.permute.xlu0 %847
  %851 = vrot.lane.b32.xlu0 %v837, 24
  %v852 = vpop.permute.xlu0 %851
  %v854 = vsel %vm395, %v504, %v844
  %vm855 = vcmask 130048
  %v856 = vsel %vm855, %v854, %v848
  %vm857 = vcmask 195584
  %v858 = vsel %vm857, %v856, %v852
  %v859 = vpack.c.bf16 %v388, %v385
  %v861 = vshrl.u32 %v859, 16
  %v863 = vrot.slane %v861, 2
  %v864 = vshll.u32 %v859, 16
  %v866 = vrot.slane %v864, 3
  %v867 = vor.u32 %v863, %v866
  %868 = vrot.lane.b32.xlu0 %v867, 96
  %v869 = vpop.permute.xlu0 %868
  %v871 = vsel %vm395, %v867, 0
  %v874 = vsel %vm395, %v869, 0
  %876 = vmatprep.subr.bf16.mxu0 0
  %877 = vmatpush1.bf16.xpose.msra.mxu0 %v874
  %878 = vmatprep.subr.bf16.mxu0 0
  %879 = vmatpush1.bf16.xpose.msra.mxu0 0
  %880 = vmatprep.subr.bf16.mxu0 0
  %881 = vmatpush1.bf16.xpose.msra.mxu0 0
  %882 = vmatprep.subr.bf16.mxu0 0
  %883 = vmatpush1.bf16.xpose.msra.mxu0 0
  %884 = vmatprep.subr.bf16.mxu0 0
  %885 = vmatpush1.bf16.xpose.msra.mxu0 0
  %886 = vmatprep.subr.bf16.mxu0 0
  %887 = vmatpush1.bf16.xpose.msra.mxu0 0
  %888 = vmatprep.subr.bf16.mxu0 0
  %889 = vmatpush1.bf16.xpose.msra.mxu0 0
  %890 = vmatprep.subr.bf16.mxu0 0
  %891 = vmatpush1.bf16.xpose.msra.mxu0 0
  %892 = vmatprep.subr.bf16.mxu0 0
  %893 = vmatpush1.bf16.xpose.msra.mxu0 0
  %894 = vmatprep.subr.bf16.mxu0 0
  %895 = vmatpush1.bf16.xpose.msra.mxu0 0
  %896 = vmatprep.subr.bf16.mxu0 0
  %897 = vmatpush1.bf16.xpose.msra.mxu0 0
  %898 = vmatprep.subr.bf16.mxu0 0
  %899 = vmatpush1.bf16.xpose.msra.mxu0 0
  %900 = vmatprep.subr.bf16.mxu0 0
  %901 = vmatpush1.bf16.xpose.msra.mxu0 0
  %902 = vmatprep.subr.bf16.mxu0 0
  %903 = vmatpush1.bf16.xpose.msra.mxu0 0
  %904 = vmatprep.subr.bf16.mxu0 0
  %905 = vmatpush1.bf16.xpose.msra.mxu0 0
  %906 = vmatprep.subr.bf16.mxu0 0
  %907 = vmatpush1.bf16.xpose.msra.mxu0 0
  %908 = vmatprep.mubr.bf16.mxu0 0
  %909 = vmatmul.mubr.bf16.gmra.mrb[0].mxu0 %v871
  %v910 = vpop.f32.mrb[0].mxu0
  %v911 = vadd.f32 0.0, %v910
  %v912 = vpop.f32.mrb[0].mxu0
  %v913 = vpop.f32.mrb[0].mxu0
  %v914 = vpop.f32.mrb[0].mxu0
  %915 = vdwg.mxu0
  %v916 = vmul.f32 %v911, 0.35355338
  %v917 = vsel %vm443, %v916, -inf
  %918 = vmax.xlane.f32.xlu0 %v917
  %v919 = vpop.xlane.xlu0 %918
  %v920 = vsub.f32 %v916, %v919
  %v921 = vmul.f32 %v920, 1.442695
  %v922 = vpow.pop %v921
  %v923 = vsel %vm443, %v922, 0.0
  %924 = vadd.xlane.f32.xlu0 %v923
  %v925 = vpop.xlane.xlu0 %924
  %v926 = vrcp.pop %v925
  %v927 = vmul.f32 %v922, %v926
  %v928 = vpack.c.bf16 %v927, %v927
  %929 = vrot.lane.b32.xlu0 %v867, 64
  %v930 = vpop.permute.xlu0 %929
  %v932 = vsel %vm458, %v928, 0
  %v935 = vand.u32 %v930, %v465
  %937 = vmatprep.subr.bf16.mxu0 0
  %938 = vmatpush1.bf16.msra.mxu0 %v935
  %939 = vmatprep.subr.bf16.mxu0 0
  %940 = vmatpush1.bf16.msra.mxu0 0
  %941 = vmatprep.subr.bf16.mxu0 0
  %942 = vmatpush1.bf16.msra.mxu0 0
  %943 = vmatprep.subr.bf16.mxu0 0
  %944 = vmatpush1.bf16.msra.mxu0 0
  %945 = vmatprep.subr.bf16.mxu0 0
  %946 = vmatpush1.bf16.msra.mxu0 0
  %947 = vmatprep.subr.bf16.mxu0 0
  %948 = vmatpush1.bf16.msra.mxu0 0
  %949 = vmatprep.subr.bf16.mxu0 0
  %950 = vmatpush1.bf16.msra.mxu0 0
  %951 = vmatprep.subr.bf16.mxu0 0
  %952 = vmatpush1.bf16.msra.mxu0 0
  %953 = vmatprep.subr.bf16.mxu0 0
  %954 = vmatpush1.bf16.msra.mxu0 0
  %955 = vmatprep.subr.bf16.mxu0 0
  %956 = vmatpush1.bf16.msra.mxu0 0
  %957 = vmatprep.subr.bf16.mxu0 0
  %958 = vmatpush1.bf16.msra.mxu0 0
  %959 = vmatprep.subr.bf16.mxu0 0
  %960 = vmatpush1.bf16.msra.mxu0 0
  %961 = vmatprep.subr.bf16.mxu0 0
  %962 = vmatpush1.bf16.msra.mxu0 0
  %963 = vmatprep.subr.bf16.mxu0 0
  %964 = vmatpush1.bf16.msra.mxu0 0
  %965 = vmatprep.subr.bf16.mxu0 0
  %966 = vmatpush1.bf16.msra.mxu0 0
  %967 = vmatprep.subr.bf16.mxu0 0
  %968 = vmatpush1.bf16.msra.mxu0 0
  %969 = vmatprep.mubr.bf16.mxu0 0
  %970 = vmatmul.mubr.bf16.gmra.mrb[0].mxu0 %v932
  %v971 = vpop.f32.mrb[0].mxu0
  %v972 = vadd.f32 0.0, %v971
  %v973 = vpop.f32.mrb[0].mxu0
  %v974 = vpop.f32.mrb[0].mxu0
  %v975 = vpop.f32.mrb[0].mxu0
  %976 = vdwg.mxu0
  %977 = vrot.lane.b32.xlu0 %v867, 120
  %v978 = vpop.permute.xlu0 %977
  %979 = vrot.lane.b32.xlu0 %v867, 88
  %v980 = vpop.permute.xlu0 %979
  %v982 = vsel %vm395, %v978, 0
  %v985 = vsel %vm395, %v980, 0
  %987 = vmatprep.subr.bf16.mxu0 0
  %988 = vmatpush1.bf16.xpose.msra.mxu0 %v985
  %989 = vmatprep.subr.bf16.mxu0 0
  %990 = vmatpush1.bf16.xpose.msra.mxu0 0
  %991 = vmatprep.subr.bf16.mxu0 0
  %992 = vmatpush1.bf16.xpose.msra.mxu0 0
  %993 = vmatprep.subr.bf16.mxu0 0
  %994 = vmatpush1.bf16.xpose.msra.mxu0 0
  %995 = vmatprep.subr.bf16.mxu0 0
  %996 = vmatpush1.bf16.xpose.msra.mxu0 0
  %997 = vmatprep.subr.bf16.mxu0 0
  %998 = vmatpush1.bf16.xpose.msra.mxu0 0
  %999 = vmatprep.subr.bf16.mxu0 0
  %1000 = vmatpush1.bf16.xpose.msra.mxu0 0
  %1001 = vmatprep.subr.bf16.mxu0 0
  %1002 = vmatpush1.bf16.xpose.msra.mxu0 0
  %1003 = vmatprep.subr.bf16.mxu0 0
  %1004 = vmatpush1.bf16.xpose.msra.mxu0 0
  %1005 = vmatprep.subr.bf16.mxu0 0
  %1006 = vmatpush1.bf16.xpose.msra.mxu0 0
  %1007 = vmatprep.subr.bf16.mxu0 0
  %1008 = vmatpush1.bf16.xpose.msra.mxu0 0
  %1009 = vmatprep.subr.bf16.mxu0 0
  %1010 = vmatpush1.bf16.xpose.msra.mxu0 0
  %1011 = vmatprep.subr.bf16.mxu0 0
  %1012 = vmatpush1.bf16.xpose.msra.mxu0 0
  %1013 = vmatprep.subr.bf16.mxu0 0
  %1014 = vmatpush1.bf16.xpose.msra.mxu0 0
  %1015 = vmatprep.subr.bf16.mxu0 0
  %1016 = vmatpush1.bf16.xpose.msra.mxu0 0
  %1017 = vmatprep.subr.bf16.mxu0 0
  %1018 = vmatpush1.bf16.xpose.msra.mxu0 0
  %1019 = vmatprep.mubr.bf16.mxu0 0
  %1020 = vmatmul.mubr.bf16.gmra.mrb[0].mxu0 %v982
  %v1021 = vpop.f32.mrb[0].mxu0
  %v1022 = vadd.f32 0.0, %v1021
  %v1023 = vpop.f32.mrb[0].mxu0
  %v1024 = vpop.f32.mrb[0].mxu0
  %v1025 = vpop.f32.mrb[0].mxu0
  %1026 = vdwg.mxu0
  %v1027 = vmul.f32 %v1022, 0.35355338
  %v1028 = vsel %vm443, %v1027, -inf
  %1029 = vmax.xlane.f32.xlu0 %v1028
  %v1030 = vpop.xlane.xlu0 %1029
  %v1031 = vsub.f32 %v1027, %v1030
  %v1032 = vmul.f32 %v1031, 1.442695
  %v1033 = vpow.pop %v1032
  %v1034 = vsel %vm443, %v1033, 0.0
  %1035 = vadd.xlane.f32.xlu0 %v1034
  %v1036 = vpop.xlane.xlu0 %1035
  %v1037 = vrcp.pop %v1036
  %v1038 = vmul.f32 %v1033, %v1037
  %v1039 = vpack.c.bf16 %v1038, %v1038
  %1040 = vrot.lane.b32.xlu0 %v867, 56
  %v1041 = vpop.permute.xlu0 %1040
  %v1043 = vsel %vm458, %v1039, 0
  %v1046 = vand.u32 %v1041, %v465
  %1048 = vmatprep.subr.bf16.mxu0 0
  %1049 = vmatpush1.bf16.msra.mxu0 %v1046
  %1050 = vmatprep.subr.bf16.mxu0 0
  %1051 = vmatpush1.bf16.msra.mxu0 0
  %1052 = vmatprep.subr.bf16.mxu0 0
  %1053 = vmatpush1.bf16.msra.mxu0 0
  %1054 = vmatprep.subr.bf16.mxu0 0
  %1055 = vmatpush1.bf16.msra.mxu0 0
  %1056 = vmatprep.subr.bf16.mxu0 0
  %1057 = vmatpush1.bf16.msra.mxu0 0
  %1058 = vmatprep.subr.bf16.mxu0 0
  %1059 = vmatpush1.bf16.msra.mxu0 0
  %1060 = vmatprep.subr.bf16.mxu0 0
  %1061 = vmatpush1.bf16.msra.mxu0 0
  %1062 = vmatprep.subr.bf16.mxu0 0
  %1063 = vmatpush1.bf16.msra.mxu0 0
  %1064 = vmatprep.subr.bf16.mxu0 0
  %1065 = vmatpush1.bf16.msra.mxu0 0
  %1066 = vmatprep.subr.bf16.mxu0 0
  %1067 = vmatpush1.bf16.msra.mxu0 0
  %1068 = vmatprep.subr.bf16.mxu0 0
  %1069 = vmatpush1.bf16.msra.mxu0 0
  %1070 = vmatprep.subr.bf16.mxu0 0
  %1071 = vmatpush1.bf16.msra.mxu0 0
  %1072 = vmatprep.subr.bf16.mxu0 0
  %1073 = vmatpush1.bf16.msra.mxu0 0
  %1074 = vmatprep.subr.bf16.mxu0 0
  %1075 = vmatpush1.bf16.msra.mxu0 0
  %1076 = vmatprep.subr.bf16.mxu0 0
  %1077 = vmatpush1.bf16.msra.mxu0 0
  %1078 = vmatprep.subr.bf16.mxu0 0
  %1079 = vmatpush1.bf16.msra.mxu0 0
  %1080 = vmatprep.mubr.bf16.mxu0 0
  %1081 = vmatmul.mubr.bf16.gmra.mrb[0].mxu0 %v1043
  %v1082 = vpop.f32.mrb[0].mxu0
  %v1083 = vadd.f32 0.0, %v1082
  %v1084 = vpop.f32.mrb[0].mxu0
  %v1085 = vpop.f32.mrb[0].mxu0
  %v1086 = vpop.f32.mrb[0].mxu0
  %1087 = vdwg.mxu0
  %1088 = vrot.lane.b32.xlu0 %v867, 112
  %v1089 = vpop.permute.xlu0 %1088
  %1090 = vrot.lane.b32.xlu0 %v867, 80
  %v1091 = vpop.permute.xlu0 %1090
  %v1093 = vsel %vm395, %v1089, 0
  %v1096 = vsel %vm395, %v1091, 0
  %1098 = vmatprep.subr.bf16.mxu0 0
  %1099 = vmatpush1.bf16.xpose.msra.mxu0 %v1096
  %1100 = vmatprep.subr.bf16.mxu0 0
  %1101 = vmatpush1.bf16.xpose.msra.mxu0 0
  %1102 = vmatprep.subr.bf16.mxu0 0
  %1103 = vmatpush1.bf16.xpose.msra.mxu0 0
  %1104 = vmatprep.subr.bf16.mxu0 0
  %1105 = vmatpush1.bf16.xpose.msra.mxu0 0
  %1106 = vmatprep.subr.bf16.mxu0 0
  %1107 = vmatpush1.bf16.xpose.msra.mxu0 0
  %1108 = vmatprep.subr.bf16.mxu0 0
  %1109 = vmatpush1.bf16.xpose.msra.mxu0 0
  %1110 = vmatprep.subr.bf16.mxu0 0
  %1111 = vmatpush1.bf16.xpose.msra.mxu0 0
  %1112 = vmatprep.subr.bf16.mxu0 0
  %1113 = vmatpush1.bf16.xpose.msra.mxu0 0
  %1114 = vmatprep.subr.bf16.mxu0 0
  %1115 = vmatpush1.bf16.xpose.msra.mxu0 0
  %1116 = vmatprep.subr.bf16.mxu0 0
  %1117 = vmatpush1.bf16.xpose.msra.mxu0 0
  %1118 = vmatprep.subr.bf16.mxu0 0
  %1119 = vmatpush1.bf16.xpose.msra.mxu0 0
  %1120 = vmatprep.subr.bf16.mxu0 0
  %1121 = vmatpush1.bf16.xpose.msra.mxu0 0
  %1122 = vmatprep.subr.bf16.mxu0 0
  %1123 = vmatpush1.bf16.xpose.msra.mxu0 0
  %1124 = vmatprep.subr.bf16.mxu0 0
  %1125 = vmatpush1.bf16.xpose.msra.mxu0 0
  %1126 = vmatprep.subr.bf16.mxu0 0
  %1127 = vmatpush1.bf16.xpose.msra.mxu0 0
  %1128 = vmatprep.subr.bf16.mxu0 0
  %1129 = vmatpush1.bf16.xpose.msra.mxu0 0
  %1130 = vmatprep.mubr.bf16.mxu0 0
  %1131 = vmatmul.mubr.bf16.gmra.mrb[0].mxu0 %v1093
  %v1132 = vpop.f32.mrb[0].mxu0
  %v1133 = vadd.f32 0.0, %v1132
  %v1134 = vpop.f32.mrb[0].mxu0
  %v1135 = vpop.f32.mrb[0].mxu0
  %v1136 = vpop.f32.mrb[0].mxu0
  %1137 = vdwg.mxu0
  %v1138 = vmul.f32 %v1133, 0.35355338
  %v1139 = vsel %vm443, %v1138, -inf
  %1140 = vmax.xlane.f32.xlu0 %v1139
  %v1141 = vpop.xlane.xlu0 %1140
  %v1142 = vsub.f32 %v1138, %v1141
  %v1143 = vmul.f32 %v1142, 1.442695
  %v1144 = vpow.pop %v1143
  %v1145 = vsel %vm443, %v1144, 0.0
  %1146 = vadd.xlane.f32.xlu0 %v1145
  %v1147 = vpop.xlane.xlu0 %1146
  %v1148 = vrcp.pop %v1147
  %v1149 = vmul.f32 %v1144, %v1148
  %v1150 = vpack.c.bf16 %v1149, %v1149
  %1151 = vrot.lane.b32.xlu0 %v867, 48
  %v1152 = vpop.permute.xlu0 %1151
  %v1154 = vsel %vm458, %v1150, 0
  %v1157 = vand.u32 %v1152, %v465
  %1159 = vmatprep.subr.bf16.mxu0 0
  %1160 = vmatpush1.bf16.msra.mxu0 %v1157
  %1161 = vmatprep.subr.bf16.mxu0 0
  %1162 = vmatpush1.bf16.msra.mxu0 0
  %1163 = vmatprep.subr.bf16.mxu0 0
  %1164 = vmatpush1.bf16.msra.mxu0 0
  %1165 = vmatprep.subr.bf16.mxu0 0
  %1166 = vmatpush1.bf16.msra.mxu0 0
  %1167 = vmatprep.subr.bf16.mxu0 0
  %1168 = vmatpush1.bf16.msra.mxu0 0
  %1169 = vmatprep.subr.bf16.mxu0 0
  %1170 = vmatpush1.bf16.msra.mxu0 0
  %1171 = vmatprep.subr.bf16.mxu0 0
  %1172 = vmatpush1.bf16.msra.mxu0 0
  %1173 = vmatprep.subr.bf16.mxu0 0
  %1174 = vmatpush1.bf16.msra.mxu0 0
  %1175 = vmatprep.subr.bf16.mxu0 0
  %1176 = vmatpush1.bf16.msra.mxu0 0
  %1177 = vmatprep.subr.bf16.mxu0 0
  %1178 = vmatpush1.bf16.msra.mxu0 0
  %1179 = vmatprep.subr.bf16.mxu0 0
  %1180 = vmatpush1.bf16.msra.mxu0 0
  %1181 = vmatprep.subr.bf16.mxu0 0
  %1182 = vmatpush1.bf16.msra.mxu0 0
  %1183 = vmatprep.subr.bf16.mxu0 0
  %1184 = vmatpush1.bf16.msra.mxu0 0
  %1185 = vmatprep.subr.bf16.mxu0 0
  %1186 = vmatpush1.bf16.msra.mxu0 0
  %1187 = vmatprep.subr.bf16.mxu0 0
  %1188 = vmatpush1.bf16.msra.mxu0 0
  %1189 = vmatprep.subr.bf16.mxu0 0
  %1190 = vmatpush1.bf16.msra.mxu0 0
  %1191 = vmatprep.mubr.bf16.mxu0 0
  %1192 = vmatmul.mubr.bf16.gmra.mrb[0].mxu0 %v1154
  %v1193 = vpop.f32.mrb[0].mxu0
  %v1194 = vadd.f32 0.0, %v1193
  %v1195 = vpop.f32.mrb[0].mxu0
  %v1196 = vpop.f32.mrb[0].mxu0
  %v1197 = vpop.f32.mrb[0].mxu0
  %1198 = vdwg.mxu0
  %1199 = vrot.lane.b32.xlu0 %v867, 104
  %v1200 = vpop.permute.xlu0 %1199
  %1201 = vrot.lane.b32.xlu0 %v867, 72
  %v1202 = vpop.permute.xlu0 %1201
  %v1204 = vsel %vm395, %v1200, 0
  %v1207 = vsel %vm395, %v1202, 0
  %1209 = vmatprep.subr.bf16.mxu0 0
  %1210 = vmatpush1.bf16.xpose.msra.mxu0 %v1207
  %1211 = vmatprep.subr.bf16.mxu0 0
  %1212 = vmatpush1.bf16.xpose.msra.mxu0 0
  %1213 = vmatprep.subr.bf16.mxu0 0
  %1214 = vmatpush1.bf16.xpose.msra.mxu0 0
  %1215 = vmatprep.subr.bf16.mxu0 0
  %1216 = vmatpush1.bf16.xpose.msra.mxu0 0
  %1217 = vmatprep.subr.bf16.mxu0 0
  %1218 = vmatpush1.bf16.xpose.msra.mxu0 0
  %1219 = vmatprep.subr.bf16.mxu0 0
  %1220 = vmatpush1.bf16.xpose.msra.mxu0 0
  %1221 = vmatprep.subr.bf16.mxu0 0
  %1222 = vmatpush1.bf16.xpose.msra.mxu0 0
  %1223 = vmatprep.subr.bf16.mxu0 0
  %1224 = vmatpush1.bf16.xpose.msra.mxu0 0
  %1225 = vmatprep.subr.bf16.mxu0 0
  %1226 = vmatpush1.bf16.xpose.msra.mxu0 0
  %1227 = vmatprep.subr.bf16.mxu0 0
  %1228 = vmatpush1.bf16.xpose.msra.mxu0 0
  %1229 = vmatprep.subr.bf16.mxu0 0
  %1230 = vmatpush1.bf16.xpose.msra.mxu0 0
  %1231 = vmatprep.subr.bf16.mxu0 0
  %1232 = vmatpush1.bf16.xpose.msra.mxu0 0
  %1233 = vmatprep.subr.bf16.mxu0 0
  %1234 = vmatpush1.bf16.xpose.msra.mxu0 0
  %1235 = vmatprep.subr.bf16.mxu0 0
  %1236 = vmatpush1.bf16.xpose.msra.mxu0 0
  %1237 = vmatprep.subr.bf16.mxu0 0
  %1238 = vmatpush1.bf16.xpose.msra.mxu0 0
  %1239 = vmatprep.subr.bf16.mxu0 0
  %1240 = vmatpush1.bf16.xpose.msra.mxu0 0
  %1241 = vmatprep.mubr.bf16.mxu0 0
  %1242 = vmatmul.mubr.bf16.gmra.mrb[0].mxu0 %v1204
  %v1243 = vpop.f32.mrb[0].mxu0
  %v1244 = vadd.f32 0.0, %v1243
  %v1245 = vpop.f32.mrb[0].mxu0
  %v1246 = vpop.f32.mrb[0].mxu0
  %v1247 = vpop.f32.mrb[0].mxu0
  %1248 = vdwg.mxu0
  %v1249 = vmul.f32 %v1244, 0.35355338
  %v1250 = vsel %vm443, %v1249, -inf
  %1251 = vmax.xlane.f32.xlu0 %v1250
  %v1252 = vpop.xlane.xlu0 %1251
  %v1253 = vsub.f32 %v1249, %v1252
  %v1254 = vmul.f32 %v1253, 1.442695
  %v1255 = vpow.pop %v1254
  %v1256 = vsel %vm443, %v1255, 0.0
  %1257 = vadd.xlane.f32.xlu0 %v1256
  %v1258 = vpop.xlane.xlu0 %1257
  %v1259 = vrcp.pop %v1258
  %v1260 = vmul.f32 %v1255, %v1259
  %v1261 = vpack.c.bf16 %v1260, %v1260
  %1262 = vrot.lane.b32.xlu0 %v867, 40
  %v1263 = vpop.permute.xlu0 %1262
  %v1265 = vsel %vm458, %v1261, 0
  %v1268 = vand.u32 %v1263, %v465
  %1270 = vmatprep.subr.bf16.mxu0 0
  %1271 = vmatpush1.bf16.msra.mxu0 %v1268
  %1272 = vmatprep.subr.bf16.mxu0 0
  %1273 = vmatpush1.bf16.msra.mxu0 0
  %1274 = vmatprep.subr.bf16.mxu0 0
  %1275 = vmatpush1.bf16.msra.mxu0 0
  %1276 = vmatprep.subr.bf16.mxu0 0
  %1277 = vmatpush1.bf16.msra.mxu0 0
  %1278 = vmatprep.subr.bf16.mxu0 0
  %1279 = vmatpush1.bf16.msra.mxu0 0
  %1280 = vmatprep.subr.bf16.mxu0 0
  %1281 = vmatpush1.bf16.msra.mxu0 0
  %1282 = vmatprep.subr.bf16.mxu0 0
  %1283 = vmatpush1.bf16.msra.mxu0 0
  %1284 = vmatprep.subr.bf16.mxu0 0
  %1285 = vmatpush1.bf16.msra.mxu0 0
  %1286 = vmatprep.subr.bf16.mxu0 0
  %1287 = vmatpush1.bf16.msra.mxu0 0
  %1288 = vmatprep.subr.bf16.mxu0 0
  %1289 = vmatpush1.bf16.msra.mxu0 0
  %1290 = vmatprep.subr.bf16.mxu0 0
  %1291 = vmatpush1.bf16.msra.mxu0 0
  %1292 = vmatprep.subr.bf16.mxu0 0
  %1293 = vmatpush1.bf16.msra.mxu0 0
  %1294 = vmatprep.subr.bf16.mxu0 0
  %1295 = vmatpush1.bf16.msra.mxu0 0
  %1296 = vmatprep.subr.bf16.mxu0 0
  %1297 = vmatpush1.bf16.msra.mxu0 0
  %1298 = vmatprep.subr.bf16.mxu0 0
  %1299 = vmatpush1.bf16.msra.mxu0 0
  %1300 = vmatprep.subr.bf16.mxu0 0
  %1301 = vmatpush1.bf16.msra.mxu0 0
  %1302 = vmatprep.mubr.bf16.mxu0 0
  %1303 = vmatmul.mubr.bf16.gmra.mrb[0].mxu0 %v1265
  %v1304 = vpop.f32.mrb[0].mxu0
  %v1305 = vadd.f32 0.0, %v1304
  %v1306 = vpop.f32.mrb[0].mxu0
  %v1307 = vpop.f32.mrb[0].mxu0
  %v1308 = vpop.f32.mrb[0].mxu0
  %1309 = vdwg.mxu0
  %1311 = vrot.lane.b32.xlu0 %v1083, 8
  %v1312 = vpop.permute.xlu0 %1311
  %1315 = vrot.lane.b32.xlu0 %v1194, 16
  %v1316 = vpop.permute.xlu0 %1315
  %1319 = vrot.lane.b32.xlu0 %v1305, 24
  %v1320 = vpop.permute.xlu0 %1319
  %v1322 = vsel %vm395, %v972, %v1312
  %v1323 = vsel %vm855, %v1322, %v1316
  %v1324 = vsel %vm857, %v1323, %v1320
  %v1326 = vrot.slane %v1324, 3
  %v1328 = vsel %vm228, %v858, %v1326
  %v1329 = vld [vmem:[%s10] sm:$0xf]
  %v1330 = vld [vmem:[%s10 + $0x4] sm:$0xf]
  %v1331 = vld [vmem:[%s10 + $0x8] sm:$0xf]
  %v1332 = vld [vmem:[%s10 + $0xc] sm:$0xf]
  %v1333 = vpack.c.bf16 %v1326, %v1328
  %v1334 = vld [vmem:[%s11] sm:$0x1]
  %v1336 = vlaneseq
  %v1337 = vshrl.u32 %v1336, 7
  %v1338 = vsub.s32 0, %v1337
  %v1339 = vrot.slane %v1334, %v1338
  %v1345 = vunpack.c.l.b16 %v1329
  %v1346 = vunpack.c.l.b16 %v1330
  %v1347 = vunpack.c.l.b16 %v1331
  %v1348 = vunpack.c.l.b16 %v1332
  %v1349 = vpack.c.b16 %v1346, %v1345
  %v1350 = vpack.c.b16 %v1348, %v1347
  %v1354 = vsel %vm234, %v1333, 0
  %1356 = vmatprep.subr.bf16.mxu0 0
  %1357 = vmatpush1.bf16.msra.mxu0 %v1349
  %1358 = vmatprep.subr.bf16.mxu0 0
  %1359 = vmatpush1.bf16.msra.mxu0 %v1350
  %1360 = vmatprep.subr.bf16.mxu0 0
  %1361 = vmatpush1.bf16.msra.mxu0 0
  %1362 = vmatprep.subr.bf16.mxu0 0
  %1363 = vmatpush1.bf16.msra.mxu0 0
  %1364 = vmatprep.subr.bf16.mxu0 0
  %1365 = vmatpush1.bf16.msra.mxu0 0
  %1366 = vmatprep.subr.bf16.mxu0 0
  %1367 = vmatpush1.bf16.msra.mxu0 0
  %1368 = vmatprep.subr.bf16.mxu0 0
  %1369 = vmatpush1.bf16.msra.mxu0 0
  %1370 = vmatprep.subr.bf16.mxu0 0
  %1371 = vmatpush1.bf16.msra.mxu0 0
  %1372 = vmatprep.subr.bf16.mxu0 0
  %1373 = vmatpush1.bf16.msra.mxu0 0
  %1374 = vmatprep.subr.bf16.mxu0 0
  %1375 = vmatpush1.bf16.msra.mxu0 0
  %1376 = vmatprep.subr.bf16.mxu0 0
  %1377 = vmatpush1.bf16.msra.mxu0 0
  %1378 = vmatprep.subr.bf16.mxu0 0
  %1379 = vmatpush1.bf16.msra.mxu0 0
  %1380 = vmatprep.subr.bf16.mxu0 0
  %1381 = vmatpush1.bf16.msra.mxu0 0
  %1382 = vmatprep.subr.bf16.mxu0 0
  %1383 = vmatpush1.bf16.msra.mxu0 0
  %1384 = vmatprep.subr.bf16.mxu0 0
  %1385 = vmatpush1.bf16.msra.mxu0 0
  %1386 = vmatprep.subr.bf16.mxu0 0
  %1387 = vmatpush1.bf16.msra.mxu0 0
  %1388 = vmatprep.mubr.bf16.mxu0 0
  %1389 = vmatmul.mubr.bf16.gmra.mrb[0].mxu0 %v1354
  %v1390 = vpop.f32.mrb[0].mxu0
  %v1391 = vadd.f32 %v1339, %v1390
  %v1392 = vpop.f32.mrb[0].mxu0
  %v1393 = vpop.f32.mrb[0].mxu0
  %v1394 = vadd.f32 %v1339, %v1393
  %v1395 = vpop.f32.mrb[0].mxu0
  %1396 = vdwg.mxu0
  %v1397 = vadd.f32 %v277, %v1391
  %v1398 = vadd.f32 %v278, %v1394
  %v1399 = vld [vmem:[%s12] sm:$0x1]
  %v1400 = vld [vmem:[%s13] sm:$0x1]
  %v1401 = vsel %vm234, %v1397, 0.0
  %1402 = vadd.xlane.f32.xlu0 %v1401
  %v1403 = vpop.xlane.xlu0 %1402
  %v1404 = vsel %vm238, %v1398, 0.0
  %1405 = vadd.xlane.f32.xlu0 %v1404
  %v1406 = vpop.xlane.xlu0 %1405
  %v1407 = vmul.f32 %v1403, %v242
  %v1408 = vmul.f32 %v1406, %v242
  %v1409 = vsub.f32 %v1397, %v1407
  %v1410 = vsub.f32 %v1398, %v1408
  %v1411 = vmul.f32 %v1409, %v1409
  %v1412 = vmul.f32 %v1410, %v1410
  %v1413 = vsel %vm234, %v1411, 0.0
  %1414 = vadd.xlane.f32.xlu0 %v1413
  %v1415 = vpop.xlane.xlu0 %1414
  %v1416 = vsel %vm238, %v1412, 0.0
  %1417 = vadd.xlane.f32.xlu0 %v1416
  %v1418 = vpop.xlane.xlu0 %1417
  %v1419 = vmul.f32 %v1415, %v242
  %v1420 = vmul.f32 %v1418, %v242
  %v1421 = vadd.f32 %v1419, 1e-05
  %v1422 = vadd.f32 %v1420, 1e-05
  %v1423 = vrsqrt.pop %v1421
  %v1424 = vrsqrt.pop %v1422
  %v1425 = vmul.f32 %v1409, %v1423
  %v1426 = vmul.f32 %v1410, %v1424
  %v1428 = vlaneseq
  %v1429 = vshrl.u32 %v1428, 7
  %v1430 = vsub.s32 0, %v1429
  %v1431 = vrot.slane %v1399, %v1430
  %v1433 = vmul.f32 %v1425, %v1431
  %v1434 = vmul.f32 %v1426, %v1431
  %v1436 = vlaneseq
  %v1437 = vshrl.u32 %v1436, 7
  %v1438 = vsub.s32 0, %v1437
  %v1439 = vrot.slane %v1400, %v1438
  %v1441 = vadd.f32 %v1433, %v1439
  %v1442 = vadd.f32 %v1434, %v1439
  %v1443 = vld [vmem:[%s14] sm:$0xf]
  %v1444 = vld [vmem:[%s14 + $0x4] sm:$0xf]
  %v1445 = vld [vmem:[%s14 + $0x8] sm:$0xf]
  %v1446 = vld [vmem:[%s14 + $0xc] sm:$0xf]
  %v1447 = vpack.c.bf16 %v1442, %v1441
  %v1448 = vld [vmem:[%s15] sm:$0x1]
  %v1450 = vlaneseq
  %v1451 = vshrl.u32 %v1450, 7
  %v1452 = vsub.s32 0, %v1451
  %v1453 = vrot.slane %v1448, %v1452
  %v1459 = vunpack.c.l.b16 %v1443
  %v1460 = vunpack.c.l.b16 %v1444
  %v1461 = vunpack.c.l.b16 %v1445
  %v1462 = vunpack.c.l.b16 %v1446
  %v1463 = vpack.c.b16 %v1460, %v1459
  %v1464 = vpack.c.b16 %v1462, %v1461
  %v1468 = vsel %vm234, %v1447, 0
  %1470 = vmatprep.subr.bf16.mxu0 0
  %1471 = vmatpush1.bf16.msra.mxu0 %v1463
  %1472 = vmatprep.subr.bf16.mxu0 0
  %1473 = vmatpush1.bf16.msra.mxu0 %v1464
  %1474 = vmatprep.subr.bf16.mxu0 0
  %1475 = vmatpush1.bf16.msra.mxu0 0
  %1476 = vmatprep.subr.bf16.mxu0 0
  %1477 = vmatpush1.bf16.msra.mxu0 0
  %1478 = vmatprep.subr.bf16.mxu0 0
  %1479 = vmatpush1.bf16.msra.mxu0 0
  %1480 = vmatprep.subr.bf16.mxu0 0
  %1481 = vmatpush1.bf16.msra.mxu0 0
  %1482 = vmatprep.subr.bf16.mxu0 0
  %1483 = vmatpush1.bf16.msra.mxu0 0
  %1484 = vmatprep.subr.bf16.mxu0 0
  %1485 = vmatpush1.bf16.msra.mxu0 0
  %1486 = vmatprep.subr.bf16.mxu0 0
  %1487 = vmatpush1.bf16.msra.mxu0 0
  %1488 = vmatprep.subr.bf16.mxu0 0
  %1489 = vmatpush1.bf16.msra.mxu0 0
  %1490 = vmatprep.subr.bf16.mxu0 0
  %1491 = vmatpush1.bf16.msra.mxu0 0
  %1492 = vmatprep.subr.bf16.mxu0 0
  %1493 = vmatpush1.bf16.msra.mxu0 0
  %1494 = vmatprep.subr.bf16.mxu0 0
  %1495 = vmatpush1.bf16.msra.mxu0 0
  %1496 = vmatprep.subr.bf16.mxu0 0
  %1497 = vmatpush1.bf16.msra.mxu0 0
  %1498 = vmatprep.subr.bf16.mxu0 0
  %1499 = vmatpush1.bf16.msra.mxu0 0
  %1500 = vmatprep.subr.bf16.mxu0 0
  %1501 = vmatpush1.bf16.msra.mxu0 0
  %1502 = vmatprep.mubr.bf16.mxu0 0
  %1503 = vmatmul.mubr.bf16.gmra.mrb[0].mxu0 %v1468
  %v1504 = vpop.f32.mrb[0].mxu0
  %v1505 = vadd.f32 %v1453, %v1504
  %v1506 = vpop.f32.mrb[0].mxu0
  %v1507 = vpop.f32.mrb[0].mxu0
  %v1508 = vadd.f32 %v1453, %v1507
  %v1509 = vpop.f32.mrb[0].mxu0
  %1510 = vdwg.mxu0
  %v1511 = vmul.f32 %v1505, 1.702
  %v1512 = vmul.f32 %v1508, 1.702
  %v1513 = vxor.u32 %v1511, 2147483648
  %v1514 = vxor.u32 %v1512, 2147483648
  %v1515 = vmul.f32 %v1513, 1.442695
  %v1516 = vpow.pop %v1515
  %v1517 = vmul.f32 %v1514, 1.442695
  %v1518 = vpow.pop %v1517
  %v1519 = vadd.f32 %v1516, 1.0
  %v1520 = vadd.f32 %v1518, 1.0
  %v1521 = vrcp.pop %v1519
  %v1522 = vmul.f32 1.0, %v1521
  %v1523 = vrcp.pop %v1520
  %v1524 = vmul.f32 1.0, %v1523
  %v1525 = vmul.f32 %v1505, %v1522
  %v1526 = vmul.f32 %v1508, %v1524
  %v1527 = vld [vmem:[%s16] sm:$0xf]
  %v1528 = vld [vmem:[%s16 + $0x4] sm:$0xf]
  %v1529 = vld [vmem:[%s16 + $0x8] sm:$0xf]
  %v1530 = vld [vmem:[%s16 + $0xc] sm:$0xf]
  %v1531 = vld [vmem:[%s16 + $0x10] sm:$0xf]
  %v1532 = vld [vmem:[%s16 + $0x14] sm:$0xf]
  %v1533 = vld [vmem:[%s16 + $0x18] sm:$0xf]
  %v1534 = vld [vmem:[%s16 + $0x1c] sm:$0xf]
  %v1535 = vpack.c.bf16 %v1526, %v1525
  %v1536 = vld [vmem:[%s17] sm:$0x1]
  %v1538 = vlaneseq
  %v1539 = vshrl.u32 %v1538, 7
  %v1540 = vsub.s32 0, %v1539
  %v1541 = vrot.slane %v1536, %v1540
  %v1551 = vunpack.c.l.b16 %v1527
  %v1552 = vunpack.c.l.b16 %v1528
  %v1553 = vunpack.c.l.b16 %v1529
  %v1554 = vunpack.c.l.b16 %v1530
  %v1555 = vunpack.c.l.b16 %v1531
  %v1556 = vunpack.c.l.b16 %v1532
  %v1557 = vunpack.c.l.b16 %v1533
  %v1558 = vunpack.c.l.b16 %v1534
  %v1559 = vpack.c.b16 %v1552, %v1551
  %v1560 = vpack.c.b16 %v1554, %v1553
  %v1561 = vpack.c.b16 %v1556, %v1555
  %v1562 = vpack.c.b16 %v1558, %v1557
  %v1568 = vsel %vm160, %v1535, 0
  %1570 = vmatprep.subr.bf16.mxu0 0
  %1571 = vmatpush1.bf16.msra.mxu0 %v1559
  %1572 = vmatprep.subr.bf16.mxu0 0
  %1573 = vmatpush1.bf16.msra.mxu0 %v1560
  %1574 = vmatprep.subr.bf16.mxu0 0
  %1575 = vmatpush1.bf16.msra.mxu0 %v1561
  %1576 = vmatprep.subr.bf16.mxu0 0
  %1577 = vmatpush1.bf16.msra.mxu0 %v1562
  %1578 = vmatprep.subr.bf16.mxu0 0
  %1579 = vmatpush1.bf16.msra.mxu0 0
  %1580 = vmatprep.subr.bf16.mxu0 0
  %1581 = vmatpush1.bf16.msra.mxu0 0
  %1582 = vmatprep.subr.bf16.mxu0 0
  %1583 = vmatpush1.bf16.msra.mxu0 0
  %1584 = vmatprep.subr.bf16.mxu0 0
  %1585 = vmatpush1.bf16.msra.mxu0 0
  %1586 = vmatprep.subr.bf16.mxu0 0
  %1587 = vmatpush1.bf16.msra.mxu0 0
  %1588 = vmatprep.subr.bf16.mxu0 0
  %1589 = vmatpush1.bf16.msra.mxu0 0
  %1590 = vmatprep.subr.bf16.mxu0 0
  %1591 = vmatpush1.bf16.msra.mxu0 0
  %1592 = vmatprep.subr.bf16.mxu0 0
  %1593 = vmatpush1.bf16.msra.mxu0 0
  %1594 = vmatprep.subr.bf16.mxu0 0
  %1595 = vmatpush1.bf16.msra.mxu0 0
  %1596 = vmatprep.subr.bf16.mxu0 0
  %1597 = vmatpush1.bf16.msra.mxu0 0
  %1598 = vmatprep.subr.bf16.mxu0 0
  %1599 = vmatpush1.bf16.msra.mxu0 0
  %1600 = vmatprep.subr.bf16.mxu0 0
  %1601 = vmatpush1.bf16.msra.mxu0 0
  %1602 = vmatprep.mubr.bf16.mxu0 0
  %1603 = vmatmul.mubr.bf16.gmra.mrb[0].mxu0 %v1568
  %v1604 = vpop.f32.mrb[0].mxu0
  %v1605 = vadd.f32 %v1541, %v1604
  %v1606 = vpop.f32.mrb[0].mxu0
  %v1607 = vpop.f32.mrb[0].mxu0
  %v1608 = vadd.f32 %v1541, %v1607
  %v1609 = vpop.f32.mrb[0].mxu0
  %1610 = vdwg.mxu0
  %v1611 = vadd.f32 %v1397, %v1605
  %v1612 = vadd.f32 %v1398, %v1608
  %v1614 = vrot.slane %v1611, 1
  %1615 = vrot.lane.b32.xlu0 %v1614, 32
  %v1616 = vpop.permute.xlu0 %1615
  %v1618 = vrot.slane %v1611, 2
  %1619 = vrot.lane.b32.xlu0 %v1618, 64
  %v1620 = vpop.permute.xlu0 %1619
  %v1622 = vrot.slane %v1611, 3
  %1623 = vrot.lane.b32.xlu0 %v1622, 96
  %v1624 = vpop.permute.xlu0 %1623
  %v1626 = vsel %vm234, %v1611, %v1616
  %v1627 = vsel %vm160, %v1626, %v1620
  %vm1628 = vcmask 785408
  %v1629 = vsel %vm1628, %v1627, %v1624
  %v1631 = vrot.slane %v1612, 2
  %1632 = vrot.lane.b32.xlu0 %v1631, 64
  %v1633 = vpop.permute.xlu0 %1632
  %v1635 = vrot.slane %v1612, 3
  %1636 = vrot.lane.b32.xlu0 %v1635, 96
  %v1637 = vpop.permute.xlu0 %1636
  %v1639 = vsel %vm160, %v1626, %v1633
  %v1640 = vsel %vm1628, %v1639, %v1637
  %v1642 = vrot.slane %v1629, 1
  %v1645 = vrot.slane %v1640, 5
  %v1647 = vsel %vm226, %v1642, %v1645
  %1648 = vst [vmem:[%s18] sm:$0x3] %v1647
  // Predicated region
  $region74: #{clip_vision_tower_forward.1} parent=0 // pred_check
    _
  $region75: #{clip_vision_tower_forward.1} parent=0 // pred_check_branch
    %1650 = sbr.rel (0) target = $region77
  $region76: #{clip_vision_tower_forward.1} parent=0 // pred_region
    _
  $region77: #{clip_vision_tower_forward.1} parent=0 // pred_fallthru
    _
  // Predicated region
  $region78: #{clip_vision_tower_forward.1} parent=0 // pred_check
    _
  $region79: #{clip_vision_tower_forward.1} parent=0 // pred_check_branch
    %1652 = sbr.rel (0) target = $region81
  $region80: #{clip_vision_tower_forward.1} parent=0 // pred_region
    _
  $region81: #{clip_vision_tower_forward.1} parent=0 // pred_fallthru
    _

</llo_original>
